<compile_context>
chip_gen: v6e
topology: v6e:2x2x1
jax: 0.10.0
libtpu: 0.0.40
codegen_flags: <defaults>
</compile_context>

<pallas_src>
import jax
import jax.numpy as jnp
from jax.experimental import pallas as pl
from jax.experimental.pallas import tpu as pltpu


def rbs_dense_kernel(w_ref, rho_ref, out_ref):
    # w_ref:   (I*I, I*I) VMEM — loop-invariant kron(U, U)^T (fetched once).
    # rho_ref: (Bt, I*I)  VMEM — current chunk of flattened density matrices.
    # out_ref: (Bt, I*I)  VMEM — corresponding output chunk.
    out_ref[...] = jnp.dot(
        rho_ref[...], w_ref[...],
        preferred_element_type=jnp.float32,
    ).astype(out_ref.dtype)


def rbs_dense_density(angle, rbs_unitaries, rho, *, block_b=512):
    """angle: scalar f32; rbs_unitaries: (3, I, I) f32; rho: (B, I, I) f32."""
    b, i_dim, _ = rho.shape
    i2 = i_dim * i_dim

    # ---- loop-invariant precompute, done once in the wrapper (XLA) --------
    c = jnp.cos(angle).astype(jnp.float32)
    s = jnp.sin(angle).astype(jnp.float32)
    u = (rbs_unitaries[0].astype(jnp.float32) * c
         + rbs_unitaries[1].astype(jnp.float32) * s
         + rbs_unitaries[2].astype(jnp.float32))
    # vec_row(U rho U^T) = vec_row(rho) @ kron(U, U)^T, and kron(U,U)^T = kron(U^T,U^T).
    w_t = jnp.kron(u.T, u.T)                         # (I*I, I*I) f32

    rho_flat = rho.reshape(b, i2)                    # free bitcast, lane-dense last dim

    # ---- batch tiling ------------------------------------------------------
    bt = int(min(block_b, b))
    if bt < b:
        bt = max(8, (bt // 8) * 8)                   # sublane-aligned partial blocks
    elif b >= 16:
        # Force >= 2 grid blocks so v7x's two TensorCores both get work
        # (also enables cross-step DMA/compute pipelining on 1-TC chips).
        half = -(-b // 2)
        half = ((half + 7) // 8) * 8
        if half < b:
            bt = half
    n_blocks = pl.cdiv(b, bt)                        # ragged tail -> masked boundary block

    flops = 2 * b * i2 * i2
    bytes_accessed = (2 * b * i2 + i2 * i2) * 4

    out_flat = pl.pallas_call(
        rbs_dense_kernel,
        out_shape=jax.ShapeDtypeStruct((b, i2), rho.dtype),
        grid_spec=pltpu.PrefetchScalarGridSpec(
            num_scalar_prefetch=0,
            grid=(n_blocks,),
            in_specs=[
                pl.BlockSpec((i2, i2), lambda bi: (0, 0)),   # kron(U,U)^T, loop-invariant
                pl.BlockSpec((bt, i2), lambda bi: (bi, 0)),  # rho chunk
            ],
            out_specs=pl.BlockSpec((bt, i2), lambda bi: (bi, 0)),
        ),
        compiler_params=pltpu.CompilerParams(
            dimension_semantics=("parallel",),
            vmem_limit_bytes=48 * 1024 * 1024,       # fits v7x's 64 MiB; >> actual ~11 MiB use
        ),
        cost_estimate=pl.CostEstimate(
            flops=flops, transcendentals=0, bytes_accessed=bytes_accessed),
    )(w_t, rho_flat)

    return out_flat.reshape(b, i_dim, i_dim)


def rbs_dense_density_ref(angle, rbs_unitaries, rho):
    u = (rbs_unitaries[0] * jnp.cos(angle)
         + rbs_unitaries[1] * jnp.sin(angle)
         + rbs_unitaries[2])
    return jnp.einsum("ij,bjk,lk->bil", u, rho, u,
                      precision=jax.lax.Precision.HIGHEST)


if __name__ == "__main__":
    key = jax.random.PRNGKey(0)
    k_angle, k_unit, k_rho = jax.random.split(key, 3)

    batch = 2
    I = 28  # binom(8, 2): density-operator dimension for 8 qubits, Hamming weight 2

    angle = jax.random.uniform(k_angle, (), dtype=jnp.float32)          # nn.Parameter
    rbs_unitaries = jax.random.normal(k_unit, (3, I, I), dtype=jnp.float32)
    rho = jax.random.normal(k_rho, (batch, I, I), dtype=jnp.float32)

    out = jax.jit(rbs_dense_density)(angle, rbs_unitaries, rho)
    out = jax.block_until_ready(out)

    ref = rbs_dense_density_ref(angle, rbs_unitaries, rho)
    assert out.shape == (batch, I, I)
    rel_err = jnp.linalg.norm(out - ref) / jnp.linalg.norm(ref)
    assert rel_err < 1e-3, f"relative Frobenius error too large: {rel_err}"
    assert jnp.allclose(out, ref, atol=2e-3, rtol=2e-3)

    print("KERNEL_OK")
</pallas_src>

<mosaic_0001>
module attributes {stable_mosaic.version = 11 : i64} {
  func.func @rbs_dense_kernel(%arg0: i32, %arg1: memref<784x784xf32, #tpu.memory_space<vmem>>, %arg2: memref<2x784xf32, #tpu.memory_space<vmem>>, %arg3: memref<2x784xf32, #tpu.memory_space<vmem>>) attributes {dimension_semantics = [#tpu.dimension_semantics<parallel>], iteration_bounds = array<i64: 1>, scalar_prefetch = 0 : i64, scratch_operands = 0 : i64, tpu.core_type = #tpu.core_type<tc>, window_params = [{pipeline_mode = #tpu.pipeline_mode<synchronous>, transform_indices = @transform_0, window_bounds = array<i64: 784, 784>}, {transform_indices = @transform_1, window_bounds = array<i64: 2, 784>}, {transform_indices = @transform_2, window_bounds = array<i64: 2, 784>}]} {
    %c0 = arith.constant 0 : index
    %c0_0 = arith.constant 0 : index
    %0 = vector.load %arg2[%c0, %c0_0] : memref<2x784xf32, #tpu.memory_space<vmem>>, vector<2x784xf32>
    %c0_1 = arith.constant 0 : index
    %c0_2 = arith.constant 0 : index
    %1 = vector.load %arg1[%c0_1, %c0_2] : memref<784x784xf32, #tpu.memory_space<vmem>>, vector<784x784xf32>
    %cst = arith.constant dense<0.000000e+00> : vector<2x784xf32>
    %2 = tpu.matmul %0, %1, %cst {dimension_numbers = #tpu.dot_dimension_numbers<[1], [0], [0], [1], [0, 0, 1, 1], [], []>} : vector<2x784xf32>, vector<784x784xf32>, vector<2x784xf32> -> vector<2x784xf32>
    %c0_3 = arith.constant 0 : index
    %c0_4 = arith.constant 0 : index
    %3 = vector.load %arg3[%c0_3, %c0_4] : memref<2x784xf32, #tpu.memory_space<vmem>>, vector<2x784xf32>
    tpu.vector_store %arg3[%c0_3, %c0_4], %2 {strides = array<i32>} : memref<2x784xf32, #tpu.memory_space<vmem>>, vector<2x784xf32>,
    return
  }
  func.func @transform_0(%arg0: i32) -> (i32, i32) {
    %c0_i32 = arith.constant 0 : i32
    %c0_i32_0 = arith.constant 0 : i32
    %c0_i32_1 = arith.constant 0 : i32
    return %c0_i32, %c0_i32_0 : i32, i32
  }
  func.func @transform_1(%arg0: i32) -> (i32, i32) {
    %c0_i32 = arith.constant 0 : i32
    %c0_i32_0 = arith.constant 0 : i32
    return %arg0, %c0_i32 : i32, i32
  }
  func.func @transform_2(%arg0: i32) -> (i32, i32) {
    %c0_i32 = arith.constant 0 : i32
    %c0_i32_0 = arith.constant 0 : i32
    return %arg0, %c0_i32 : i32, i32
  }
}

</mosaic_0001>

<llo_original>
// kernel: rbs_dense_density.1
$region0: #{rbs_dense_density.1}
  #allocation0 [shape = 'u32[]', space=smem, size = 0x4, offset = 0x4, fixed_abs, tag = 'smem constant byte address 0x4 - core index']
  #allocation1 [shape = 'u32[144,128]{1,0:T(1,128)}', space=vmem, size = 0x12000, scoped, tag = 'internal scratch']
  %s0 = inlined_call_operand.vmem [shape: f32[784,784], index: 0, kind: input, shape index: {}]
  %s1 = inlined_call_operand.vmem [shape: f32[2,784], index: 1, kind: input, shape index: {}]
  %s2 = inlined_call_operand.vmem [shape: f32[2,784], index: 2, kind: output, shape index: {}]
  %s3 = sld [smem:[#allocation0]]
  $region18: #{rbs_dense_density.1} parent=0
    _
  %s5 = ssub.s32 1, %s3
  %s6 = scalar_select 0, %s5, %s3
  // Predicated region
  $region2: #{rbs_dense_density.1} parent=0 // pred_check
    _
  $region3: #{rbs_dense_density.1} parent=0 // pred_check_branch
    %8 = sbr.rel (0) target = $region5
  $region4: #{rbs_dense_density.1} parent=0 // pred_region
    _
  $region5: #{rbs_dense_density.1} parent=0 // pred_fallthru
    _
  // Predicated region
  $region6: #{rbs_dense_density.1} parent=0 // pred_check
    _
  $region7: #{rbs_dense_density.1} parent=0 // pred_check_branch
    %10 = sbr.rel (0) target = $region9
  $region8: #{rbs_dense_density.1} parent=0 // pred_region
    _
  $region9: #{rbs_dense_density.1} parent=0 // pred_fallthru
    _
  %v11 = vld [vmem:[%s1] sm:$0xff]
  %v12 = vld [vmem:[%s1 + $0x8] sm:$0x3f]
  %v13 = vld [vmem:[%s0] sm:$0xff]
  %v14 = vld [vmem:[%s0 + $0x8] sm:$0xff]
  %v15 = vld [vmem:[%s0 + $0x10] sm:$0xff]
  %v16 = vld [vmem:[%s0 + $0x18] sm:$0xff]
  %v17 = vld [vmem:[%s0 + $0x20] sm:$0xff]
  %v18 = vld [vmem:[%s0 + $0x28] sm:$0xff]
  %v19 = vld [vmem:[%s0 + $0x30] sm:$0xff]
  %v20 = vld [vmem:[%s0 + $0x38] sm:$0xff]
  %v21 = vld [vmem:[%s0 + $0x40] sm:$0xff]
  %v22 = vld [vmem:[%s0 + $0x48] sm:$0xff]
  %v23 = vld [vmem:[%s0 + $0x50] sm:$0xff]
  %v24 = vld [vmem:[%s0 + $0x58] sm:$0xff]
  %v25 = vld [vmem:[%s0 + $0x60] sm:$0xff]
  %v26 = vld [vmem:[%s0 + $0x68] sm:$0xff]
  %v27 = vld [vmem:[%s0 + $0x70] sm:$0xff]
  %v28 = vld [vmem:[%s0 + $0x78] sm:$0xff]
  %v29 = vld [vmem:[%s0 + $0x80] sm:$0xff]
  %v30 = vld [vmem:[%s0 + $0x88] sm:$0xff]
  %v31 = vld [vmem:[%s0 + $0x90] sm:$0xff]
  %v32 = vld [vmem:[%s0 + $0x98] sm:$0xff]
  %v33 = vld [vmem:[%s0 + $0xa0] sm:$0xff]
  %v34 = vld [vmem:[%s0 + $0xa8] sm:$0xff]
  %v35 = vld [vmem:[%s0 + $0xb0] sm:$0xff]
  %v36 = vld [vmem:[%s0 + $0xb8] sm:$0xff]
  %v37 = vld [vmem:[%s0 + $0xc0] sm:$0xff]
  %v38 = vld [vmem:[%s0 + $0xc8] sm:$0xff]
  %v39 = vld [vmem:[%s0 + $0xd0] sm:$0xff]
  %v40 = vld [vmem:[%s0 + $0xd8] sm:$0xff]
  %v41 = vld [vmem:[%s0 + $0xe0] sm:$0xff]
  %v42 = vld [vmem:[%s0 + $0xe8] sm:$0xff]
  %v43 = vld [vmem:[%s0 + $0xf0] sm:$0xff]
  %v44 = vld [vmem:[%s0 + $0xf8] sm:$0xff]
  %v45 = vld [vmem:[%s0 + $0x100] sm:$0xff]
  %v46 = vld [vmem:[%s0 + $0x108] sm:$0xff]
  %v47 = vld [vmem:[%s0 + $0x110] sm:$0xff]
  %v48 = vld [vmem:[%s0 + $0x118] sm:$0xff]
  %v49 = vld [vmem:[%s0 + $0x120] sm:$0xff]
  %v50 = vld [vmem:[%s0 + $0x128] sm:$0xff]
  %v51 = vld [vmem:[%s0 + $0x130] sm:$0xff]
  %v52 = vld [vmem:[%s0 + $0x138] sm:$0xff]
  %v53 = vld [vmem:[%s0 + $0x140] sm:$0xff]
  %v54 = vld [vmem:[%s0 + $0x148] sm:$0xff]
  %v55 = vld [vmem:[%s0 + $0x150] sm:$0xff]
  %v56 = vld [vmem:[%s0 + $0x158] sm:$0xff]
  %v57 = vld [vmem:[%s0 + $0x160] sm:$0xff]
  %v58 = vld [vmem:[%s0 + $0x168] sm:$0xff]
  %v59 = vld [vmem:[%s0 + $0x170] sm:$0xff]
  %v60 = vld [vmem:[%s0 + $0x178] sm:$0xff]
  %v61 = vld [vmem:[%s0 + $0x180] sm:$0xff]
  %v62 = vld [vmem:[%s0 + $0x188] sm:$0xff]
  %v63 = vld [vmem:[%s0 + $0x190] sm:$0xff]
  %v64 = vld [vmem:[%s0 + $0x198] sm:$0xff]
  %v65 = vld [vmem:[%s0 + $0x1a0] sm:$0xff]
  %v66 = vld [vmem:[%s0 + $0x1a8] sm:$0xff]
  %v67 = vld [vmem:[%s0 + $0x1b0] sm:$0xff]
  %v68 = vld [vmem:[%s0 + $0x1b8] sm:$0xff]
  %v69 = vld [vmem:[%s0 + $0x1c0] sm:$0xff]
  %v70 = vld [vmem:[%s0 + $0x1c8] sm:$0xff]
  %v71 = vld [vmem:[%s0 + $0x1d0] sm:$0xff]
  %v72 = vld [vmem:[%s0 + $0x1d8] sm:$0xff]
  %v73 = vld [vmem:[%s0 + $0x1e0] sm:$0xff]
  %v74 = vld [vmem:[%s0 + $0x1e8] sm:$0xff]
  %v75 = vld [vmem:[%s0 + $0x1f0] sm:$0xff]
  %v76 = vld [vmem:[%s0 + $0x1f8] sm:$0xff]
  %v77 = vld [vmem:[%s0 + $0x200] sm:$0xff]
  %v78 = vld [vmem:[%s0 + $0x208] sm:$0xff]
  %v79 = vld [vmem:[%s0 + $0x210] sm:$0xff]
  %v80 = vld [vmem:[%s0 + $0x218] sm:$0xff]
  %v81 = vld [vmem:[%s0 + $0x220] sm:$0xff]
  %v82 = vld [vmem:[%s0 + $0x228] sm:$0xff]
  %v83 = vld [vmem:[%s0 + $0x230] sm:$0xff]
  %v84 = vld [vmem:[%s0 + $0x238] sm:$0xff]
  %v85 = vld [vmem:[%s0 + $0x240] sm:$0xff]
  %v86 = vld [vmem:[%s0 + $0x248] sm:$0xff]
  %v87 = vld [vmem:[%s0 + $0x250] sm:$0xff]
  %v88 = vld [vmem:[%s0 + $0x258] sm:$0xff]
  %v89 = vld [vmem:[%s0 + $0x260] sm:$0xff]
  %v90 = vld [vmem:[%s0 + $0x268] sm:$0xff]
  %v91 = vld [vmem:[%s0 + $0x270] sm:$0xff]
  %v92 = vld [vmem:[%s0 + $0x278] sm:$0xff]
  %v93 = vld [vmem:[%s0 + $0x280] sm:$0xff]
  %v94 = vld [vmem:[%s0 + $0x288] sm:$0xff]
  %v95 = vld [vmem:[%s0 + $0x290] sm:$0xff]
  %v96 = vld [vmem:[%s0 + $0x298] sm:$0xff]
  %v97 = vld [vmem:[%s0 + $0x2a0] sm:$0xff]
  %v98 = vld [vmem:[%s0 + $0x2a8] sm:$0xff]
  %v99 = vld [vmem:[%s0 + $0x2b0] sm:$0xff]
  %v100 = vld [vmem:[%s0 + $0x2b8] sm:$0xff]
  %v101 = vld [vmem:[%s0 + $0x2c0] sm:$0xff]
  %v102 = vld [vmem:[%s0 + $0x2c8] sm:$0xff]
  %v103 = vld [vmem:[%s0 + $0x2d0] sm:$0xff]
  %v104 = vld [vmem:[%s0 + $0x2d8] sm:$0xff]
  %v105 = vld [vmem:[%s0 + $0x2e0] sm:$0xff]
  %v106 = vld [vmem:[%s0 + $0x2e8] sm:$0xff]
  %v107 = vld [vmem:[%s0 + $0x2f0] sm:$0xff]
  %v108 = vld [vmem:[%s0 + $0x2f8] sm:$0xff]
  %v109 = vld [vmem:[%s0 + $0x300] sm:$0xff]
  %v110 = vld [vmem:[%s0 + $0x308] sm:$0xff]
  %v111 = vld [vmem:[%s0 + $0x310] sm:$0xff]
  %v112 = vld [vmem:[%s0 + $0x318] sm:$0xff]
  %v113 = vld [vmem:[%s0 + $0x320] sm:$0xff]
  %v114 = vld [vmem:[%s0 + $0x328] sm:$0xff]
  %v115 = vld [vmem:[%s0 + $0x330] sm:$0xff]
  %v116 = vld [vmem:[%s0 + $0x338] sm:$0xff]
  %v117 = vld [vmem:[%s0 + $0x340] sm:$0xff]
  %v118 = vld [vmem:[%s0 + $0x348] sm:$0xff]
  %v119 = vld [vmem:[%s0 + $0x350] sm:$0xff]
  %v120 = vld [vmem:[%s0 + $0x358] sm:$0xff]
  %v121 = vld [vmem:[%s0 + $0x360] sm:$0xff]
  %v122 = vld [vmem:[%s0 + $0x368] sm:$0xff]
  %v123 = vld [vmem:[%s0 + $0x370] sm:$0xff]
  %v124 = vld [vmem:[%s0 + $0x378] sm:$0xff]
  %v125 = vld [vmem:[%s0 + $0x380] sm:$0xff]
  %v126 = vld [vmem:[%s0 + $0x388] sm:$0xff]
  %v127 = vld [vmem:[%s0 + $0x390] sm:$0xff]
  %v128 = vld [vmem:[%s0 + $0x398] sm:$0xff]
  %v129 = vld [vmem:[%s0 + $0x3a0] sm:$0xff]
  %v130 = vld [vmem:[%s0 + $0x3a8] sm:$0xff]
  %v131 = vld [vmem:[%s0 + $0x3b0] sm:$0xff]
  %v132 = vld [vmem:[%s0 + $0x3b8] sm:$0xff]
  %v133 = vld [vmem:[%s0 + $0x3c0] sm:$0xff]
  %v134 = vld [vmem:[%s0 + $0x3c8] sm:$0xff]
  %v135 = vld [vmem:[%s0 + $0x3d0] sm:$0xff]
  %v136 = vld [vmem:[%s0 + $0x3d8] sm:$0xff]
  %v137 = vld [vmem:[%s0 + $0x3e0] sm:$0xff]
  %v138 = vld [vmem:[%s0 + $0x3e8] sm:$0xff]
  %v139 = vld [vmem:[%s0 + $0x3f0] sm:$0xff]
  %v140 = vld [vmem:[%s0 + $0x3f8] sm:$0xff]
  %v141 = vld [vmem:[%s0 + $0x400] sm:$0xff]
  %v142 = vld [vmem:[%s0 + $0x408] sm:$0xff]
  %v143 = vld [vmem:[%s0 + $0x410] sm:$0xff]
  %v144 = vld [vmem:[%s0 + $0x418] sm:$0xff]
  %v145 = vld [vmem:[%s0 + $0x420] sm:$0xff]
  %v146 = vld [vmem:[%s0 + $0x428] sm:$0xff]
  %v147 = vld [vmem:[%s0 + $0x430] sm:$0xff]
  %v148 = vld [vmem:[%s0 + $0x438] sm:$0xff]
  %v149 = vld [vmem:[%s0 + $0x440] sm:$0xff]
  %v150 = vld [vmem:[%s0 + $0x448] sm:$0xff]
  %v151 = vld [vmem:[%s0 + $0x450] sm:$0xff]
  %v152 = vld [vmem:[%s0 + $0x458] sm:$0xff]
  %v153 = vld [vmem:[%s0 + $0x460] sm:$0xff]
  %v154 = vld [vmem:[%s0 + $0x468] sm:$0xff]
  %v155 = vld [vmem:[%s0 + $0x470] sm:$0xff]
  %v156 = vld [vmem:[%s0 + $0x478] sm:$0xff]
  %v157 = vld [vmem:[%s0 + $0x480] sm:$0xff]
  %v158 = vld [vmem:[%s0 + $0x488] sm:$0xff]
  %v159 = vld [vmem:[%s0 + $0x490] sm:$0xff]
  %v160 = vld [vmem:[%s0 + $0x498] sm:$0xff]
  %v161 = vld [vmem:[%s0 + $0x4a0] sm:$0xff]
  %v162 = vld [vmem:[%s0 + $0x4a8] sm:$0xff]
  %v163 = vld [vmem:[%s0 + $0x4b0] sm:$0xff]
  %v164 = vld [vmem:[%s0 + $0x4b8] sm:$0xff]
  %v165 = vld [vmem:[%s0 + $0x4c0] sm:$0xff]
  %v166 = vld [vmem:[%s0 + $0x4c8] sm:$0xff]
  %v167 = vld [vmem:[%s0 + $0x4d0] sm:$0xff]
  %v168 = vld [vmem:[%s0 + $0x4d8] sm:$0xff]
  %v169 = vld [vmem:[%s0 + $0x4e0] sm:$0xff]
  %v170 = vld [vmem:[%s0 + $0x4e8] sm:$0xff]
  %v171 = vld [vmem:[%s0 + $0x4f0] sm:$0xff]
  %v172 = vld [vmem:[%s0 + $0x4f8] sm:$0xff]
  %v173 = vld [vmem:[%s0 + $0x500] sm:$0xff]
  %v174 = vld [vmem:[%s0 + $0x508] sm:$0xff]
  %v175 = vld [vmem:[%s0 + $0x510] sm:$0xff]
  %v176 = vld [vmem:[%s0 + $0x518] sm:$0xff]
  %v177 = vld [vmem:[%s0 + $0x520] sm:$0xff]
  %v178 = vld [vmem:[%s0 + $0x528] sm:$0xff]
  %v179 = vld [vmem:[%s0 + $0x530] sm:$0xff]
  %v180 = vld [vmem:[%s0 + $0x538] sm:$0xff]
  %v181 = vld [vmem:[%s0 + $0x540] sm:$0xff]
  %v182 = vld [vmem:[%s0 + $0x548] sm:$0xff]
  %v183 = vld [vmem:[%s0 + $0x550] sm:$0xff]
  %v184 = vld [vmem:[%s0 + $0x558] sm:$0xff]
  %v185 = vld [vmem:[%s0 + $0x560] sm:$0xff]
  %v186 = vld [vmem:[%s0 + $0x568] sm:$0xff]
  %v187 = vld [vmem:[%s0 + $0x570] sm:$0xff]
  %v188 = vld [vmem:[%s0 + $0x578] sm:$0xff]
  %v189 = vld [vmem:[%s0 + $0x580] sm:$0xff]
  %v190 = vld [vmem:[%s0 + $0x588] sm:$0xff]
  %v191 = vld [vmem:[%s0 + $0x590] sm:$0xff]
  %v192 = vld [vmem:[%s0 + $0x598] sm:$0xff]
  %v193 = vld [vmem:[%s0 + $0x5a0] sm:$0xff]
  %v194 = vld [vmem:[%s0 + $0x5a8] sm:$0xff]
  %v195 = vld [vmem:[%s0 + $0x5b0] sm:$0xff]
  %v196 = vld [vmem:[%s0 + $0x5b8] sm:$0xff]
  %v197 = vld [vmem:[%s0 + $0x5c0] sm:$0xff]
  %v198 = vld [vmem:[%s0 + $0x5c8] sm:$0xff]
  %v199 = vld [vmem:[%s0 + $0x5d0] sm:$0xff]
  %v200 = vld [vmem:[%s0 + $0x5d8] sm:$0xff]
  %v201 = vld [vmem:[%s0 + $0x5e0] sm:$0xff]
  %v202 = vld [vmem:[%s0 + $0x5e8] sm:$0xff]
  %v203 = vld [vmem:[%s0 + $0x5f0] sm:$0xff]
  %v204 = vld [vmem:[%s0 + $0x5f8] sm:$0xff]
  %v205 = vld [vmem:[%s0 + $0x600] sm:$0xff]
  %v206 = vld [vmem:[%s0 + $0x608] sm:$0xff]
  %v207 = vld [vmem:[%s0 + $0x610] sm:$0xff]
  %v208 = vld [vmem:[%s0 + $0x618] sm:$0xff]
  %v209 = vld [vmem:[%s0 + $0x620] sm:$0xff]
  %v210 = vld [vmem:[%s0 + $0x628] sm:$0xff]
  %v211 = vld [vmem:[%s0 + $0x630] sm:$0xff]
  %v212 = vld [vmem:[%s0 + $0x638] sm:$0xff]
  %v213 = vld [vmem:[%s0 + $0x640] sm:$0xff]
  %v214 = vld [vmem:[%s0 + $0x648] sm:$0xff]
  %v215 = vld [vmem:[%s0 + $0x650] sm:$0xff]
  %v216 = vld [vmem:[%s0 + $0x658] sm:$0xff]
  %v217 = vld [vmem:[%s0 + $0x660] sm:$0xff]
  %v218 = vld [vmem:[%s0 + $0x668] sm:$0xff]
  %v219 = vld [vmem:[%s0 + $0x670] sm:$0xff]
  %v220 = vld [vmem:[%s0 + $0x678] sm:$0xff]
  %v221 = vld [vmem:[%s0 + $0x680] sm:$0xff]
  %v222 = vld [vmem:[%s0 + $0x688] sm:$0xff]
  %v223 = vld [vmem:[%s0 + $0x690] sm:$0xff]
  %v224 = vld [vmem:[%s0 + $0x698] sm:$0xff]
  %v225 = vld [vmem:[%s0 + $0x6a0] sm:$0xff]
  %v226 = vld [vmem:[%s0 + $0x6a8] sm:$0xff]
  %v227 = vld [vmem:[%s0 + $0x6b0] sm:$0xff]
  %v228 = vld [vmem:[%s0 + $0x6b8] sm:$0xff]
  %v229 = vld [vmem:[%s0 + $0x6c0] sm:$0xff]
  %v230 = vld [vmem:[%s0 + $0x6c8] sm:$0xff]
  %v231 = vld [vmem:[%s0 + $0x6d0] sm:$0xff]
  %v232 = vld [vmem:[%s0 + $0x6d8] sm:$0xff]
  %v233 = vld [vmem:[%s0 + $0x6e0] sm:$0xff]
  %v234 = vld [vmem:[%s0 + $0x6e8] sm:$0xff]
  %v235 = vld [vmem:[%s0 + $0x6f0] sm:$0xff]
  %v236 = vld [vmem:[%s0 + $0x6f8] sm:$0xff]
  %v237 = vld [vmem:[%s0 + $0x700] sm:$0xff]
  %v238 = vld [vmem:[%s0 + $0x708] sm:$0xff]
  %v239 = vld [vmem:[%s0 + $0x710] sm:$0xff]
  %v240 = vld [vmem:[%s0 + $0x718] sm:$0xff]
  %v241 = vld [vmem:[%s0 + $0x720] sm:$0xff]
  %v242 = vld [vmem:[%s0 + $0x728] sm:$0xff]
  %v243 = vld [vmem:[%s0 + $0x730] sm:$0xff]
  %v244 = vld [vmem:[%s0 + $0x738] sm:$0xff]
  %v245 = vld [vmem:[%s0 + $0x740] sm:$0xff]
  %v246 = vld [vmem:[%s0 + $0x748] sm:$0xff]
  %v247 = vld [vmem:[%s0 + $0x750] sm:$0xff]
  %v248 = vld [vmem:[%s0 + $0x758] sm:$0xff]
  %v249 = vld [vmem:[%s0 + $0x760] sm:$0xff]
  %v250 = vld [vmem:[%s0 + $0x768] sm:$0xff]
  %v251 = vld [vmem:[%s0 + $0x770] sm:$0xff]
  %v252 = vld [vmem:[%s0 + $0x778] sm:$0xff]
  %v253 = vld [vmem:[%s0 + $0x780] sm:$0xff]
  %v254 = vld [vmem:[%s0 + $0x788] sm:$0xff]
  %v255 = vld [vmem:[%s0 + $0x790] sm:$0xff]
  %v256 = vld [vmem:[%s0 + $0x798] sm:$0xff]
  %v257 = vld [vmem:[%s0 + $0x7a0] sm:$0xff]
  %v258 = vld [vmem:[%s0 + $0x7a8] sm:$0xff]
  %v259 = vld [vmem:[%s0 + $0x7b0] sm:$0xff]
  %v260 = vld [vmem:[%s0 + $0x7b8] sm:$0xff]
  %v261 = vld [vmem:[%s0 + $0x7c0] sm:$0xff]
  %v262 = vld [vmem:[%s0 + $0x7c8] sm:$0xff]
  %v263 = vld [vmem:[%s0 + $0x7d0] sm:$0xff]
  %v264 = vld [vmem:[%s0 + $0x7d8] sm:$0xff]
  %v265 = vld [vmem:[%s0 + $0x7e0] sm:$0xff]
  %v266 = vld [vmem:[%s0 + $0x7e8] sm:$0xff]
  %v267 = vld [vmem:[%s0 + $0x7f0] sm:$0xff]
  %v268 = vld [vmem:[%s0 + $0x7f8] sm:$0xff]
  %v269 = vld [vmem:[%s0 + $0x800] sm:$0xff]
  %v270 = vld [vmem:[%s0 + $0x808] sm:$0xff]
  %v271 = vld [vmem:[%s0 + $0x810] sm:$0xff]
  %v272 = vld [vmem:[%s0 + $0x818] sm:$0xff]
  %v273 = vld [vmem:[%s0 + $0x820] sm:$0xff]
  %v274 = vld [vmem:[%s0 + $0x828] sm:$0xff]
  %v275 = vld [vmem:[%s0 + $0x830] sm:$0xff]
  %v276 = vld [vmem:[%s0 + $0x838] sm:$0xff]
  %v277 = vld [vmem:[%s0 + $0x840] sm:$0xff]
  %v278 = vld [vmem:[%s0 + $0x848] sm:$0xff]
  %v279 = vld [vmem:[%s0 + $0x850] sm:$0xff]
  %v280 = vld [vmem:[%s0 + $0x858] sm:$0xff]
  %v281 = vld [vmem:[%s0 + $0x860] sm:$0xff]
  %v282 = vld [vmem:[%s0 + $0x868] sm:$0xff]
  %v283 = vld [vmem:[%s0 + $0x870] sm:$0xff]
  %v284 = vld [vmem:[%s0 + $0x878] sm:$0xff]
  %v285 = vld [vmem:[%s0 + $0x880] sm:$0xff]
  %v286 = vld [vmem:[%s0 + $0x888] sm:$0xff]
  %v287 = vld [vmem:[%s0 + $0x890] sm:$0xff]
  %v288 = vld [vmem:[%s0 + $0x898] sm:$0xff]
  %v289 = vld [vmem:[%s0 + $0x8a0] sm:$0xff]
  %v290 = vld [vmem:[%s0 + $0x8a8] sm:$0xff]
  %v291 = vld [vmem:[%s0 + $0x8b0] sm:$0xff]
  %v292 = vld [vmem:[%s0 + $0x8b8] sm:$0xff]
  %v293 = vld [vmem:[%s0 + $0x8c0] sm:$0xff]
  %v294 = vld [vmem:[%s0 + $0x8c8] sm:$0xff]
  %v295 = vld [vmem:[%s0 + $0x8d0] sm:$0xff]
  %v296 = vld [vmem:[%s0 + $0x8d8] sm:$0xff]
  %v297 = vld [vmem:[%s0 + $0x8e0] sm:$0xff]
  %v298 = vld [vmem:[%s0 + $0x8e8] sm:$0xff]
  %v299 = vld [vmem:[%s0 + $0x8f0] sm:$0xff]
  %v300 = vld [vmem:[%s0 + $0x8f8] sm:$0xff]
  %v301 = vld [vmem:[%s0 + $0x900] sm:$0xff]
  %v302 = vld [vmem:[%s0 + $0x908] sm:$0xff]
  %v303 = vld [vmem:[%s0 + $0x910] sm:$0xff]
  %v304 = vld [vmem:[%s0 + $0x918] sm:$0xff]
  %v305 = vld [vmem:[%s0 + $0x920] sm:$0xff]
  %v306 = vld [vmem:[%s0 + $0x928] sm:$0xff]
  %v307 = vld [vmem:[%s0 + $0x930] sm:$0xff]
  %v308 = vld [vmem:[%s0 + $0x938] sm:$0xff]
  %v309 = vld [vmem:[%s0 + $0x940] sm:$0xff]
  %v310 = vld [vmem:[%s0 + $0x948] sm:$0xff]
  %v311 = vld [vmem:[%s0 + $0x950] sm:$0xff]
  %v312 = vld [vmem:[%s0 + $0x958] sm:$0xff]
  %v313 = vld [vmem:[%s0 + $0x960] sm:$0xff]
  %v314 = vld [vmem:[%s0 + $0x968] sm:$0xff]
  %v315 = vld [vmem:[%s0 + $0x970] sm:$0xff]
  %v316 = vld [vmem:[%s0 + $0x978] sm:$0xff]
  %v317 = vld [vmem:[%s0 + $0x980] sm:$0xff]
  %v318 = vld [vmem:[%s0 + $0x988] sm:$0xff]
  %v319 = vld [vmem:[%s0 + $0x990] sm:$0xff]
  %v320 = vld [vmem:[%s0 + $0x998] sm:$0xff]
  %v321 = vld [vmem:[%s0 + $0x9a0] sm:$0xff]
  %v322 = vld [vmem:[%s0 + $0x9a8] sm:$0xff]
  %v323 = vld [vmem:[%s0 + $0x9b0] sm:$0xff]
  %v324 = vld [vmem:[%s0 + $0x9b8] sm:$0xff]
  %v325 = vld [vmem:[%s0 + $0x9c0] sm:$0xff]
  %v326 = vld [vmem:[%s0 + $0x9c8] sm:$0xff]
  %v327 = vld [vmem:[%s0 + $0x9d0] sm:$0xff]
  %v328 = vld [vmem:[%s0 + $0x9d8] sm:$0xff]
  %v329 = vld [vmem:[%s0 + $0x9e0] sm:$0xff]
  %v330 = vld [vmem:[%s0 + $0x9e8] sm:$0xff]
  %v331 = vld [vmem:[%s0 + $0x9f0] sm:$0xff]
  %v332 = vld [vmem:[%s0 + $0x9f8] sm:$0xff]
  %v333 = vld [vmem:[%s0 + $0xa00] sm:$0xff]
  %v334 = vld [vmem:[%s0 + $0xa08] sm:$0xff]
  %v335 = vld [vmem:[%s0 + $0xa10] sm:$0xff]
  %v336 = vld [vmem:[%s0 + $0xa18] sm:$0xff]
  %v337 = vld [vmem:[%s0 + $0xa20] sm:$0xff]
  %v338 = vld [vmem:[%s0 + $0xa28] sm:$0xff]
  %v339 = vld [vmem:[%s0 + $0xa30] sm:$0xff]
  %v340 = vld [vmem:[%s0 + $0xa38] sm:$0xff]
  %v341 = vld [vmem:[%s0 + $0xa40] sm:$0xff]
  %v342 = vld [vmem:[%s0 + $0xa48] sm:$0xff]
  %v343 = vld [vmem:[%s0 + $0xa50] sm:$0xff]
  %v344 = vld [vmem:[%s0 + $0xa58] sm:$0xff]
  %v345 = vld [vmem:[%s0 + $0xa60] sm:$0xff]
  %v346 = vld [vmem:[%s0 + $0xa68] sm:$0xff]
  %v347 = vld [vmem:[%s0 + $0xa70] sm:$0xff]
  %v348 = vld [vmem:[%s0 + $0xa78] sm:$0xff]
  %v349 = vld [vmem:[%s0 + $0xa80] sm:$0xff]
  %v350 = vld [vmem:[%s0 + $0xa88] sm:$0xff]
  %v351 = vld [vmem:[%s0 + $0xa90] sm:$0xff]
  %v352 = vld [vmem:[%s0 + $0xa98] sm:$0xff]
  %v353 = vld [vmem:[%s0 + $0xaa0] sm:$0xff]
  %v354 = vld [vmem:[%s0 + $0xaa8] sm:$0xff]
  %v355 = vld [vmem:[%s0 + $0xab0] sm:$0xff]
  %v356 = vld [vmem:[%s0 + $0xab8] sm:$0xff]
  %v357 = vld [vmem:[%s0 + $0xac0] sm:$0xff]
  %v358 = vld [vmem:[%s0 + $0xac8] sm:$0xff]
  %v359 = vld [vmem:[%s0 + $0xad0] sm:$0xff]
  %v360 = vld [vmem:[%s0 + $0xad8] sm:$0xff]
  %v361 = vld [vmem:[%s0 + $0xae0] sm:$0xff]
  %v362 = vld [vmem:[%s0 + $0xae8] sm:$0xff]
  %v363 = vld [vmem:[%s0 + $0xaf0] sm:$0xff]
  %v364 = vld [vmem:[%s0 + $0xaf8] sm:$0xff]
  %v365 = vld [vmem:[%s0 + $0xb00] sm:$0xff]
  %v366 = vld [vmem:[%s0 + $0xb08] sm:$0xff]
  %v367 = vld [vmem:[%s0 + $0xb10] sm:$0xff]
  %v368 = vld [vmem:[%s0 + $0xb18] sm:$0xff]
  %v369 = vld [vmem:[%s0 + $0xb20] sm:$0xff]
  %v370 = vld [vmem:[%s0 + $0xb28] sm:$0xff]
  %v371 = vld [vmem:[%s0 + $0xb30] sm:$0xff]
  %v372 = vld [vmem:[%s0 + $0xb38] sm:$0xff]
  %v373 = vld [vmem:[%s0 + $0xb40] sm:$0xff]
  %v374 = vld [vmem:[%s0 + $0xb48] sm:$0xff]
  %v375 = vld [vmem:[%s0 + $0xb50] sm:$0xff]
  %v376 = vld [vmem:[%s0 + $0xb58] sm:$0xff]
  %v377 = vld [vmem:[%s0 + $0xb60] sm:$0xff]
  %v378 = vld [vmem:[%s0 + $0xb68] sm:$0xff]
  %v379 = vld [vmem:[%s0 + $0xb70] sm:$0xff]
  %v380 = vld [vmem:[%s0 + $0xb78] sm:$0xff]
  %v381 = vld [vmem:[%s0 + $0xb80] sm:$0xff]
  %v382 = vld [vmem:[%s0 + $0xb88] sm:$0xff]
  %v383 = vld [vmem:[%s0 + $0xb90] sm:$0xff]
  %v384 = vld [vmem:[%s0 + $0xb98] sm:$0xff]
  %v385 = vld [vmem:[%s0 + $0xba0] sm:$0xff]
  %v386 = vld [vmem:[%s0 + $0xba8] sm:$0xff]
  %v387 = vld [vmem:[%s0 + $0xbb0] sm:$0xff]
  %v388 = vld [vmem:[%s0 + $0xbb8] sm:$0xff]
  %v389 = vld [vmem:[%s0 + $0xbc0] sm:$0xff]
  %v390 = vld [vmem:[%s0 + $0xbc8] sm:$0xff]
  %v391 = vld [vmem:[%s0 + $0xbd0] sm:$0xff]
  %v392 = vld [vmem:[%s0 + $0xbd8] sm:$0xff]
  %v393 = vld [vmem:[%s0 + $0xbe0] sm:$0xff]
  %v394 = vld [vmem:[%s0 + $0xbe8] sm:$0xff]
  %v395 = vld [vmem:[%s0 + $0xbf0] sm:$0xff]
  %v396 = vld [vmem:[%s0 + $0xbf8] sm:$0xff]
  %v397 = vld [vmem:[%s0 + $0xc00] sm:$0xff]
  %v398 = vld [vmem:[%s0 + $0xc08] sm:$0xff]
  %v399 = vld [vmem:[%s0 + $0xc10] sm:$0xff]
  %v400 = vld [vmem:[%s0 + $0xc18] sm:$0xff]
  %v401 = vld [vmem:[%s0 + $0xc20] sm:$0xff]
  %v402 = vld [vmem:[%s0 + $0xc28] sm:$0xff]
  %v403 = vld [vmem:[%s0 + $0xc30] sm:$0xff]
  %v404 = vld [vmem:[%s0 + $0xc38] sm:$0xff]
  %v405 = vld [vmem:[%s0 + $0xc40] sm:$0xff]
  %v406 = vld [vmem:[%s0 + $0xc48] sm:$0xff]
  %v407 = vld [vmem:[%s0 + $0xc50] sm:$0xff]
  %v408 = vld [vmem:[%s0 + $0xc58] sm:$0xff]
  %v409 = vld [vmem:[%s0 + $0xc60] sm:$0xff]
  %v410 = vld [vmem:[%s0 + $0xc68] sm:$0xff]
  %v411 = vld [vmem:[%s0 + $0xc70] sm:$0xff]
  %v412 = vld [vmem:[%s0 + $0xc78] sm:$0xff]
  %v413 = vld [vmem:[%s0 + $0xc80] sm:$0xff]
  %v414 = vld [vmem:[%s0 + $0xc88] sm:$0xff]
  %v415 = vld [vmem:[%s0 + $0xc90] sm:$0xff]
  %v416 = vld [vmem:[%s0 + $0xc98] sm:$0xff]
  %v417 = vld [vmem:[%s0 + $0xca0] sm:$0xff]
  %v418 = vld [vmem:[%s0 + $0xca8] sm:$0xff]
  %v419 = vld [vmem:[%s0 + $0xcb0] sm:$0xff]
  %v420 = vld [vmem:[%s0 + $0xcb8] sm:$0xff]
  %v421 = vld [vmem:[%s0 + $0xcc0] sm:$0xff]
  %v422 = vld [vmem:[%s0 + $0xcc8] sm:$0xff]
  %v423 = vld [vmem:[%s0 + $0xcd0] sm:$0xff]
  %v424 = vld [vmem:[%s0 + $0xcd8] sm:$0xff]
  %v425 = vld [vmem:[%s0 + $0xce0] sm:$0xff]
  %v426 = vld [vmem:[%s0 + $0xce8] sm:$0xff]
  %v427 = vld [vmem:[%s0 + $0xcf0] sm:$0xff]
  %v428 = vld [vmem:[%s0 + $0xcf8] sm:$0xff]
  %v429 = vld [vmem:[%s0 + $0xd00] sm:$0xff]
  %v430 = vld [vmem:[%s0 + $0xd08] sm:$0xff]
  %v431 = vld [vmem:[%s0 + $0xd10] sm:$0xff]
  %v432 = vld [vmem:[%s0 + $0xd18] sm:$0xff]
  %v433 = vld [vmem:[%s0 + $0xd20] sm:$0xff]
  %v434 = vld [vmem:[%s0 + $0xd28] sm:$0xff]
  %v435 = vld [vmem:[%s0 + $0xd30] sm:$0xff]
  %v436 = vld [vmem:[%s0 + $0xd38] sm:$0xff]
  %v437 = vld [vmem:[%s0 + $0xd40] sm:$0xff]
  %v438 = vld [vmem:[%s0 + $0xd48] sm:$0xff]
  %v439 = vld [vmem:[%s0 + $0xd50] sm:$0xff]
  %v440 = vld [vmem:[%s0 + $0xd58] sm:$0xff]
  %v441 = vld [vmem:[%s0 + $0xd60] sm:$0xff]
  %v442 = vld [vmem:[%s0 + $0xd68] sm:$0xff]
  %v443 = vld [vmem:[%s0 + $0xd70] sm:$0xff]
  %v444 = vld [vmem:[%s0 + $0xd78] sm:$0xff]
  %v445 = vld [vmem:[%s0 + $0xd80] sm:$0xff]
  %v446 = vld [vmem:[%s0 + $0xd88] sm:$0xff]
  %v447 = vld [vmem:[%s0 + $0xd90] sm:$0xff]
  %v448 = vld [vmem:[%s0 + $0xd98] sm:$0xff]
  %v449 = vld [vmem:[%s0 + $0xda0] sm:$0xff]
  %v450 = vld [vmem:[%s0 + $0xda8] sm:$0xff]
  %v451 = vld [vmem:[%s0 + $0xdb0] sm:$0xff]
  %v452 = vld [vmem:[%s0 + $0xdb8] sm:$0xff]
  %v453 = vld [vmem:[%s0 + $0xdc0] sm:$0xff]
  %v454 = vld [vmem:[%s0 + $0xdc8] sm:$0xff]
  %v455 = vld [vmem:[%s0 + $0xdd0] sm:$0xff]
  %v456 = vld [vmem:[%s0 + $0xdd8] sm:$0xff]
  %v457 = vld [vmem:[%s0 + $0xde0] sm:$0xff]
  %v458 = vld [vmem:[%s0 + $0xde8] sm:$0xff]
  %v459 = vld [vmem:[%s0 + $0xdf0] sm:$0xff]
  %v460 = vld [vmem:[%s0 + $0xdf8] sm:$0xff]
  %v461 = vld [vmem:[%s0 + $0xe00] sm:$0xff]
  %v462 = vld [vmem:[%s0 + $0xe08] sm:$0xff]
  %v463 = vld [vmem:[%s0 + $0xe10] sm:$0xff]
  %v464 = vld [vmem:[%s0 + $0xe18] sm:$0xff]
  %v465 = vld [vmem:[%s0 + $0xe20] sm:$0xff]
  %v466 = vld [vmem:[%s0 + $0xe28] sm:$0xff]
  %v467 = vld [vmem:[%s0 + $0xe30] sm:$0xff]
  %v468 = vld [vmem:[%s0 + $0xe38] sm:$0xff]
  %v469 = vld [vmem:[%s0 + $0xe40] sm:$0xff]
  %v470 = vld [vmem:[%s0 + $0xe48] sm:$0xff]
  %v471 = vld [vmem:[%s0 + $0xe50] sm:$0xff]
  %v472 = vld [vmem:[%s0 + $0xe58] sm:$0xff]
  %v473 = vld [vmem:[%s0 + $0xe60] sm:$0xff]
  %v474 = vld [vmem:[%s0 + $0xe68] sm:$0xff]
  %v475 = vld [vmem:[%s0 + $0xe70] sm:$0xff]
  %v476 = vld [vmem:[%s0 + $0xe78] sm:$0xff]
  %v477 = vld [vmem:[%s0 + $0xe80] sm:$0xff]
  %v478 = vld [vmem:[%s0 + $0xe88] sm:$0xff]
  %v479 = vld [vmem:[%s0 + $0xe90] sm:$0xff]
  %v480 = vld [vmem:[%s0 + $0xe98] sm:$0xff]
  %v481 = vld [vmem:[%s0 + $0xea0] sm:$0xff]
  %v482 = vld [vmem:[%s0 + $0xea8] sm:$0xff]
  %v483 = vld [vmem:[%s0 + $0xeb0] sm:$0xff]
  %v484 = vld [vmem:[%s0 + $0xeb8] sm:$0xff]
  %v485 = vld [vmem:[%s0 + $0xec0] sm:$0xff]
  %v486 = vld [vmem:[%s0 + $0xec8] sm:$0xff]
  %v487 = vld [vmem:[%s0 + $0xed0] sm:$0xff]
  %v488 = vld [vmem:[%s0 + $0xed8] sm:$0xff]
  %v489 = vld [vmem:[%s0 + $0xee0] sm:$0xff]
  %v490 = vld [vmem:[%s0 + $0xee8] sm:$0xff]
  %v491 = vld [vmem:[%s0 + $0xef0] sm:$0xff]
  %v492 = vld [vmem:[%s0 + $0xef8] sm:$0xff]
  %v493 = vld [vmem:[%s0 + $0xf00] sm:$0xff]
  %v494 = vld [vmem:[%s0 + $0xf08] sm:$0xff]
  %v495 = vld [vmem:[%s0 + $0xf10] sm:$0xff]
  %v496 = vld [vmem:[%s0 + $0xf18] sm:$0xff]
  %v497 = vld [vmem:[%s0 + $0xf20] sm:$0xff]
  %v498 = vld [vmem:[%s0 + $0xf28] sm:$0xff]
  %v499 = vld [vmem:[%s0 + $0xf30] sm:$0xff]
  %v500 = vld [vmem:[%s0 + $0xf38] sm:$0xff]
  %v501 = vld [vmem:[%s0 + $0xf40] sm:$0xff]
  %v502 = vld [vmem:[%s0 + $0xf48] sm:$0xff]
  %v503 = vld [vmem:[%s0 + $0xf50] sm:$0xff]
  %v504 = vld [vmem:[%s0 + $0xf58] sm:$0xff]
  %v505 = vld [vmem:[%s0 + $0xf60] sm:$0xff]
  %v506 = vld [vmem:[%s0 + $0xf68] sm:$0xff]
  %v507 = vld [vmem:[%s0 + $0xf70] sm:$0xff]
  %v508 = vld [vmem:[%s0 + $0xf78] sm:$0xff]
  %v509 = vld [vmem:[%s0 + $0xf80] sm:$0xff]
  %v510 = vld [vmem:[%s0 + $0xf88] sm:$0xff]
  %v511 = vld [vmem:[%s0 + $0xf90] sm:$0xff]
  %v512 = vld [vmem:[%s0 + $0xf98] sm:$0xff]
  %v513 = vld [vmem:[%s0 + $0xfa0] sm:$0xff]
  %v514 = vld [vmem:[%s0 + $0xfa8] sm:$0xff]
  %v515 = vld [vmem:[%s0 + $0xfb0] sm:$0xff]
  %v516 = vld [vmem:[%s0 + $0xfb8] sm:$0xff]
  %v517 = vld [vmem:[%s0 + $0xfc0] sm:$0xff]
  %v518 = vld [vmem:[%s0 + $0xfc8] sm:$0xff]
  %v519 = vld [vmem:[%s0 + $0xfd0] sm:$0xff]
  %v520 = vld [vmem:[%s0 + $0xfd8] sm:$0xff]
  %v521 = vld [vmem:[%s0 + $0xfe0] sm:$0xff]
  %v522 = vld [vmem:[%s0 + $0xfe8] sm:$0xff]
  %v523 = vld [vmem:[%s0 + $0xff0] sm:$0xff]
  %v524 = vld [vmem:[%s0 + $0xff8] sm:$0xff]
  %v525 = vld [vmem:[%s0 + $0x1000] sm:$0xff]
  %v526 = vld [vmem:[%s0 + $0x1008] sm:$0xff]
  %v527 = vld [vmem:[%s0 + $0x1010] sm:$0xff]
  %v528 = vld [vmem:[%s0 + $0x1018] sm:$0xff]
  %v529 = vld [vmem:[%s0 + $0x1020] sm:$0xff]
  %v530 = vld [vmem:[%s0 + $0x1028] sm:$0xff]
  %v531 = vld [vmem:[%s0 + $0x1030] sm:$0xff]
  %v532 = vld [vmem:[%s0 + $0x1038] sm:$0xff]
  %v533 = vld [vmem:[%s0 + $0x1040] sm:$0xff]
  %v534 = vld [vmem:[%s0 + $0x1048] sm:$0xff]
  %v535 = vld [vmem:[%s0 + $0x1050] sm:$0xff]
  %v536 = vld [vmem:[%s0 + $0x1058] sm:$0xff]
  %v537 = vld [vmem:[%s0 + $0x1060] sm:$0xff]
  %v538 = vld [vmem:[%s0 + $0x1068] sm:$0xff]
  %v539 = vld [vmem:[%s0 + $0x1070] sm:$0xff]
  %v540 = vld [vmem:[%s0 + $0x1078] sm:$0xff]
  %v541 = vld [vmem:[%s0 + $0x1080] sm:$0xff]
  %v542 = vld [vmem:[%s0 + $0x1088] sm:$0xff]
  %v543 = vld [vmem:[%s0 + $0x1090] sm:$0xff]
  %v544 = vld [vmem:[%s0 + $0x1098] sm:$0xff]
  %v545 = vld [vmem:[%s0 + $0x10a0] sm:$0xff]
  %v546 = vld [vmem:[%s0 + $0x10a8] sm:$0xff]
  %v547 = vld [vmem:[%s0 + $0x10b0] sm:$0xff]
  %v548 = vld [vmem:[%s0 + $0x10b8] sm:$0xff]
  %v549 = vld [vmem:[%s0 + $0x10c0] sm:$0xff]
  %v550 = vld [vmem:[%s0 + $0x10c8] sm:$0xff]
  %v551 = vld [vmem:[%s0 + $0x10d0] sm:$0xff]
  %v552 = vld [vmem:[%s0 + $0x10d8] sm:$0xff]
  %v553 = vld [vmem:[%s0 + $0x10e0] sm:$0xff]
  %v554 = vld [vmem:[%s0 + $0x10e8] sm:$0xff]
  %v555 = vld [vmem:[%s0 + $0x10f0] sm:$0xff]
  %v556 = vld [vmem:[%s0 + $0x10f8] sm:$0xff]
  %v557 = vld [vmem:[%s0 + $0x1100] sm:$0xff]
  %v558 = vld [vmem:[%s0 + $0x1108] sm:$0xff]
  %v559 = vld [vmem:[%s0 + $0x1110] sm:$0xff]
  %v560 = vld [vmem:[%s0 + $0x1118] sm:$0xff]
  %v561 = vld [vmem:[%s0 + $0x1120] sm:$0xff]
  %v562 = vld [vmem:[%s0 + $0x1128] sm:$0xff]
  %v563 = vld [vmem:[%s0 + $0x1130] sm:$0xff]
  %v564 = vld [vmem:[%s0 + $0x1138] sm:$0xff]
  %v565 = vld [vmem:[%s0 + $0x1140] sm:$0xff]
  %v566 = vld [vmem:[%s0 + $0x1148] sm:$0xff]
  %v567 = vld [vmem:[%s0 + $0x1150] sm:$0xff]
  %v568 = vld [vmem:[%s0 + $0x1158] sm:$0xff]
  %v569 = vld [vmem:[%s0 + $0x1160] sm:$0xff]
  %v570 = vld [vmem:[%s0 + $0x1168] sm:$0xff]
  %v571 = vld [vmem:[%s0 + $0x1170] sm:$0xff]
  %v572 = vld [vmem:[%s0 + $0x1178] sm:$0xff]
  %v573 = vld [vmem:[%s0 + $0x1180] sm:$0xff]
  %v574 = vld [vmem:[%s0 + $0x1188] sm:$0xff]
  %v575 = vld [vmem:[%s0 + $0x1190] sm:$0xff]
  %v576 = vld [vmem:[%s0 + $0x1198] sm:$0xff]
  %v577 = vld [vmem:[%s0 + $0x11a0] sm:$0xff]
  %v578 = vld [vmem:[%s0 + $0x11a8] sm:$0xff]
  %v579 = vld [vmem:[%s0 + $0x11b0] sm:$0xff]
  %v580 = vld [vmem:[%s0 + $0x11b8] sm:$0xff]
  %v581 = vld [vmem:[%s0 + $0x11c0] sm:$0xff]
  %v582 = vld [vmem:[%s0 + $0x11c8] sm:$0xff]
  %v583 = vld [vmem:[%s0 + $0x11d0] sm:$0xff]
  %v584 = vld [vmem:[%s0 + $0x11d8] sm:$0xff]
  %v585 = vld [vmem:[%s0 + $0x11e0] sm:$0xff]
  %v586 = vld [vmem:[%s0 + $0x11e8] sm:$0xff]
  %v587 = vld [vmem:[%s0 + $0x11f0] sm:$0xff]
  %v588 = vld [vmem:[%s0 + $0x11f8] sm:$0xff]
  %v589 = vld [vmem:[%s0 + $0x1200] sm:$0xff]
  %v590 = vld [vmem:[%s0 + $0x1208] sm:$0xff]
  %v591 = vld [vmem:[%s0 + $0x1210] sm:$0xff]
  %v592 = vld [vmem:[%s0 + $0x1218] sm:$0xff]
  %v593 = vld [vmem:[%s0 + $0x1220] sm:$0xff]
  %v594 = vld [vmem:[%s0 + $0x1228] sm:$0xff]
  %v595 = vld [vmem:[%s0 + $0x1230] sm:$0xff]
  %v596 = vld [vmem:[%s0 + $0x1238] sm:$0xff]
  %v597 = vld [vmem:[%s0 + $0x1240] sm:$0xff]
  %v598 = vld [vmem:[%s0 + $0x1248] sm:$0xff]
  %v599 = vld [vmem:[%s0 + $0x1250] sm:$0xff]
  %v600 = vld [vmem:[%s0 + $0x1258] sm:$0xff]
  %v601 = vld [vmem:[%s0 + $0x1260] sm:$0xff]
  %v602 = vld [vmem:[%s0 + $0x1268] sm:$0xff]
  %v603 = vld [vmem:[%s0 + $0x1270] sm:$0xff]
  %v604 = vld [vmem:[%s0 + $0x1278] sm:$0xff]
  %v605 = vld [vmem:[%s0 + $0x1280] sm:$0xff]
  %v606 = vld [vmem:[%s0 + $0x1288] sm:$0xff]
  %v607 = vld [vmem:[%s0 + $0x1290] sm:$0xff]
  %v608 = vld [vmem:[%s0 + $0x1298] sm:$0xff]
  %v609 = vld [vmem:[%s0 + $0x12a0] sm:$0xff]
  %v610 = vld [vmem:[%s0 + $0x12a8] sm:$0xff]
  %v611 = vld [vmem:[%s0 + $0x12b0] sm:$0xff]
  %v612 = vld [vmem:[%s0 + $0x12b8] sm:$0xff]
  %v613 = vld [vmem:[%s0 + $0x12c0] sm:$0xff]
  %v614 = vld [vmem:[%s0 + $0x12c8] sm:$0xff]
  %v615 = vld [vmem:[%s0 + $0x12d0] sm:$0xff]
  %v616 = vld [vmem:[%s0 + $0x12d8] sm:$0xff]
  %v617 = vld [vmem:[%s0 + $0x12e0] sm:$0xff]
  %v618 = vld [vmem:[%s0 + $0x12e8] sm:$0xff]
  %v619 = vld [vmem:[%s0 + $0x12f0] sm:$0xff]
  %v620 = vld [vmem:[%s0 + $0x12f8] sm:$0xff]
  %v621 = vld [vmem:[%s0 + $0x1300] sm:$0xff]
  %v622 = vld [vmem:[%s0 + $0x1308] sm:$0xff]
  %v623 = vld [vmem:[%s0 + $0x1310] sm:$0xff]
  %v624 = vld [vmem:[%s0 + $0x1318] sm:$0xff]
  %v625 = vld [vmem:[%s0 + $0x1320] sm:$0xff]
  %v626 = vld [vmem:[%s0 + $0x1328] sm:$0xff]
  %v627 = vld [vmem:[%s0 + $0x1330] sm:$0xff]
  %v628 = vld [vmem:[%s0 + $0x1338] sm:$0xff]
  %v629 = vld [vmem:[%s0 + $0x1340] sm:$0xff]
  %v630 = vld [vmem:[%s0 + $0x1348] sm:$0xff]
  %v631 = vld [vmem:[%s0 + $0x1350] sm:$0xff]
  %v632 = vld [vmem:[%s0 + $0x1358] sm:$0xff]
  %v633 = vld [vmem:[%s0 + $0x1360] sm:$0xff]
  %v634 = vld [vmem:[%s0 + $0x1368] sm:$0xff]
  %v635 = vld [vmem:[%s0 + $0x1370] sm:$0xff]
  %v636 = vld [vmem:[%s0 + $0x1378] sm:$0xff]
  %v637 = vld [vmem:[%s0 + $0x1380] sm:$0xff]
  %v638 = vld [vmem:[%s0 + $0x1388] sm:$0xff]
  %v639 = vld [vmem:[%s0 + $0x1390] sm:$0xff]
  %v640 = vld [vmem:[%s0 + $0x1398] sm:$0xff]
  %v641 = vld [vmem:[%s0 + $0x13a0] sm:$0xff]
  %v642 = vld [vmem:[%s0 + $0x13a8] sm:$0xff]
  %v643 = vld [vmem:[%s0 + $0x13b0] sm:$0xff]
  %v644 = vld [vmem:[%s0 + $0x13b8] sm:$0xff]
  %v645 = vld [vmem:[%s0 + $0x13c0] sm:$0xff]
  %v646 = vld [vmem:[%s0 + $0x13c8] sm:$0xff]
  %v647 = vld [vmem:[%s0 + $0x13d0] sm:$0xff]
  %v648 = vld [vmem:[%s0 + $0x13d8] sm:$0xff]
  %v649 = vld [vmem:[%s0 + $0x13e0] sm:$0xff]
  %v650 = vld [vmem:[%s0 + $0x13e8] sm:$0xff]
  %v651 = vld [vmem:[%s0 + $0x13f0] sm:$0xff]
  %v652 = vld [vmem:[%s0 + $0x13f8] sm:$0xff]
  %v653 = vld [vmem:[%s0 + $0x1400] sm:$0xff]
  %v654 = vld [vmem:[%s0 + $0x1408] sm:$0xff]
  %v655 = vld [vmem:[%s0 + $0x1410] sm:$0xff]
  %v656 = vld [vmem:[%s0 + $0x1418] sm:$0xff]
  %v657 = vld [vmem:[%s0 + $0x1420] sm:$0xff]
  %v658 = vld [vmem:[%s0 + $0x1428] sm:$0xff]
  %v659 = vld [vmem:[%s0 + $0x1430] sm:$0xff]
  %v660 = vld [vmem:[%s0 + $0x1438] sm:$0xff]
  %v661 = vld [vmem:[%s0 + $0x1440] sm:$0xff]
  %v662 = vld [vmem:[%s0 + $0x1448] sm:$0xff]
  %v663 = vld [vmem:[%s0 + $0x1450] sm:$0xff]
  %v664 = vld [vmem:[%s0 + $0x1458] sm:$0xff]
  %v665 = vld [vmem:[%s0 + $0x1460] sm:$0xff]
  %v666 = vld [vmem:[%s0 + $0x1468] sm:$0xff]
  %v667 = vld [vmem:[%s0 + $0x1470] sm:$0xff]
  %v668 = vld [vmem:[%s0 + $0x1478] sm:$0xff]
  %v669 = vld [vmem:[%s0 + $0x1480] sm:$0xff]
  %v670 = vld [vmem:[%s0 + $0x1488] sm:$0xff]
  %v671 = vld [vmem:[%s0 + $0x1490] sm:$0xff]
  %v672 = vld [vmem:[%s0 + $0x1498] sm:$0xff]
  %v673 = vld [vmem:[%s0 + $0x14a0] sm:$0xff]
  %v674 = vld [vmem:[%s0 + $0x14a8] sm:$0xff]
  %v675 = vld [vmem:[%s0 + $0x14b0] sm:$0xff]
  %v676 = vld [vmem:[%s0 + $0x14b8] sm:$0xff]
  %v677 = vld [vmem:[%s0 + $0x14c0] sm:$0xff]
  %v678 = vld [vmem:[%s0 + $0x14c8] sm:$0xff]
  %v679 = vld [vmem:[%s0 + $0x14d0] sm:$0xff]
  %v680 = vld [vmem:[%s0 + $0x14d8] sm:$0xff]
  %v681 = vld [vmem:[%s0 + $0x14e0] sm:$0xff]
  %v682 = vld [vmem:[%s0 + $0x14e8] sm:$0xff]
  %v683 = vld [vmem:[%s0 + $0x14f0] sm:$0xff]
  %v684 = vld [vmem:[%s0 + $0x14f8] sm:$0xff]
  %v685 = vld [vmem:[%s0 + $0x1500] sm:$0xff]
  %v686 = vld [vmem:[%s0 + $0x1508] sm:$0xff]
  %v687 = vld [vmem:[%s0 + $0x1510] sm:$0xff]
  %v688 = vld [vmem:[%s0 + $0x1518] sm:$0xff]
  %v689 = vld [vmem:[%s0 + $0x1520] sm:$0xff]
  %v690 = vld [vmem:[%s0 + $0x1528] sm:$0xff]
  %v691 = vld [vmem:[%s0 + $0x1530] sm:$0xff]
  %v692 = vld [vmem:[%s0 + $0x1538] sm:$0xff]
  %v693 = vld [vmem:[%s0 + $0x1540] sm:$0xff]
  %v694 = vld [vmem:[%s0 + $0x1548] sm:$0xff]
  %v695 = vld [vmem:[%s0 + $0x1550] sm:$0xff]
  %v696 = vld [vmem:[%s0 + $0x1558] sm:$0xff]
  %v697 = vld [vmem:[%s0 + $0x1560] sm:$0xff]
  %v698 = vld [vmem:[%s0 + $0x1568] sm:$0xff]
  %v701 = vcombine.high %v11, %v11
  %v703 = vunpack.c.l.s4 1983009808
  %v704 = vunpack.c.0.s8 %v703
  %v705 = vlaneseq
  %v706 = vshrl.u32 %v705, 7
  %v707 = vsub.s32 %v704, %v706
  %v708 = vrot.slane %v11, %v707
  %v710 = vunpack.c.l.s4 1983009808
  %v711 = vunpack.c.0.s8 %v710
  %v712 = vlaneseq
  %v713 = vshrl.u32 %v712, 7
  %v714 = vsub.s32 %v711, %v713
  %v715 = vrot.slane %v701, %v714
  %v716 = vcombine.high %v708, %v708
  %v717 = vcombine.high %v715, %v715
  %v718 = vcombine.high %v12, %v12
  %v720 = vunpack.c.l.s4 1983009808
  %v721 = vunpack.c.0.s8 %v720
  %v722 = vlaneseq
  %v723 = vshrl.u32 %v722, 7
  %v724 = vsub.s32 %v721, %v723
  %v725 = vrot.slane %v12, %v724
  %v727 = vunpack.c.l.s4 1983009808
  %v728 = vunpack.c.0.s8 %v727
  %v729 = vlaneseq
  %v730 = vshrl.u32 %v729, 7
  %v731 = vsub.s32 %v728, %v730
  %v732 = vrot.slane %v718, %v731
  %v733 = vcombine.high %v725, %v725
  %vm740 = vcmask 130048
  %v741 = vsel %vm740, %v732, 0
  %743 = vmatprep.subr.mxu0 %v119
  %744 = vmatpush1.msra.mxu0 %v118
  %745 = vmatprep.subr.mxu0 %v112
  %746 = vmatpush1.msra.mxu0 %v111
  %747 = vmatprep.subr.mxu0 %v105
  %748 = vmatpush1.msra.mxu0 %v104
  %749 = vmatprep.subr.mxu0 %v98
  %750 = vmatpush1.msra.mxu0 %v97
  %751 = vmatprep.subr.mxu0 %v91
  %752 = vmatpush1.msra.mxu0 %v90
  %753 = vmatprep.subr.mxu0 %v84
  %754 = vmatpush1.msra.mxu0 %v83
  %755 = vmatprep.subr.mxu0 %v77
  %756 = vmatpush1.msra.mxu0 %v76
  %757 = vmatprep.subr.mxu0 %v70
  %758 = vmatpush1.msra.mxu0 %v69
  %759 = vmatprep.subr.mxu0 %v63
  %760 = vmatpush1.msra.mxu0 %v62
  %761 = vmatprep.subr.mxu0 %v56
  %762 = vmatpush1.msra.mxu0 %v55
  %763 = vmatprep.subr.mxu0 %v49
  %764 = vmatpush1.msra.mxu0 %v48
  %765 = vmatprep.subr.mxu0 %v42
  %766 = vmatpush1.msra.mxu0 %v41
  %767 = vmatprep.subr.mxu0 %v35
  %768 = vmatpush1.msra.mxu0 %v34
  %769 = vmatprep.subr.mxu0 %v28
  %770 = vmatpush1.msra.mxu0 %v27
  %771 = vmatprep.subr.mxu0 %v21
  %772 = vmatpush1.msra.mxu0 %v20
  %773 = vmatprep.subr.mxu0 %v14
  %774 = vmatpush1.msra.mxu0 %v13
  %775 = vmatprep.subr.mxu0 %v231
  %776 = vmatpush2.msra.mxu0 %v230
  %777 = vmatprep.subr.mxu0 %v224
  %778 = vmatpush2.msra.mxu0 %v223
  %779 = vmatprep.subr.mxu0 %v217
  %780 = vmatpush2.msra.mxu0 %v216
  %781 = vmatprep.subr.mxu0 %v210
  %782 = vmatpush2.msra.mxu0 %v209
  %783 = vmatprep.subr.mxu0 %v203
  %784 = vmatpush2.msra.mxu0 %v202
  %785 = vmatprep.subr.mxu0 %v196
  %786 = vmatpush2.msra.mxu0 %v195
  %787 = vmatprep.subr.mxu0 %v189
  %788 = vmatpush2.msra.mxu0 %v188
  %789 = vmatprep.subr.mxu0 %v182
  %790 = vmatpush2.msra.mxu0 %v181
  %791 = vmatprep.subr.mxu0 %v175
  %792 = vmatpush2.msra.mxu0 %v174
  %793 = vmatprep.subr.mxu0 %v168
  %794 = vmatpush2.msra.mxu0 %v167
  %795 = vmatprep.subr.mxu0 %v161
  %796 = vmatpush2.msra.mxu0 %v160
  %797 = vmatprep.subr.mxu0 %v154
  %798 = vmatpush2.msra.mxu0 %v153
  %799 = vmatprep.subr.mxu0 %v147
  %800 = vmatpush2.msra.mxu0 %v146
  %801 = vmatprep.subr.mxu0 %v140
  %802 = vmatpush2.msra.mxu0 %v139
  %803 = vmatprep.subr.mxu0 %v133
  %804 = vmatpush2.msra.mxu0 %v132
  %805 = vmatprep.subr.mxu0 %v126
  %806 = vmatpush2.msra.mxu0 %v125
  %807 = vmatprep.mubr.f32.mxu0 %v716
  %808 = vmatmul.mubr.f32.gmra.mxu0 %v708
  %v809 = vpop.f32.mrf.mxu0
  %v810 = vadd.f32 0.0, %v809
  %v811 = vpop.f32.mrf.mxu0
  %v812 = vadd.f32 0.0, %v811
  %813 = vdwg.mxu0
  %814 = vmatprep.subr.mxu0 %v343
  %815 = vmatpush1.msra.mxu0 %v342
  %816 = vmatprep.subr.mxu0 %v336
  %817 = vmatpush1.msra.mxu0 %v335
  %818 = vmatprep.subr.mxu0 %v329
  %819 = vmatpush1.msra.mxu0 %v328
  %820 = vmatprep.subr.mxu0 %v322
  %821 = vmatpush1.msra.mxu0 %v321
  %822 = vmatprep.subr.mxu0 %v315
  %823 = vmatpush1.msra.mxu0 %v314
  %824 = vmatprep.subr.mxu0 %v308
  %825 = vmatpush1.msra.mxu0 %v307
  %826 = vmatprep.subr.mxu0 %v301
  %827 = vmatpush1.msra.mxu0 %v300
  %828 = vmatprep.subr.mxu0 %v294
  %829 = vmatpush1.msra.mxu0 %v293
  %830 = vmatprep.subr.mxu0 %v287
  %831 = vmatpush1.msra.mxu0 %v286
  %832 = vmatprep.subr.mxu0 %v280
  %833 = vmatpush1.msra.mxu0 %v279
  %834 = vmatprep.subr.mxu0 %v273
  %835 = vmatpush1.msra.mxu0 %v272
  %836 = vmatprep.subr.mxu0 %v266
  %837 = vmatpush1.msra.mxu0 %v265
  %838 = vmatprep.subr.mxu0 %v259
  %839 = vmatpush1.msra.mxu0 %v258
  %840 = vmatprep.subr.mxu0 %v252
  %841 = vmatpush1.msra.mxu0 %v251
  %842 = vmatprep.subr.mxu0 %v245
  %843 = vmatpush1.msra.mxu0 %v244
  %844 = vmatprep.subr.mxu0 %v238
  %845 = vmatpush1.msra.mxu0 %v237
  %846 = vmatprep.subr.mxu0 %v455
  %847 = vmatpush2.msra.mxu0 %v454
  %848 = vmatprep.subr.mxu0 %v448
  %849 = vmatpush2.msra.mxu0 %v447
  %850 = vmatprep.subr.mxu0 %v441
  %851 = vmatpush2.msra.mxu0 %v440
  %852 = vmatprep.subr.mxu0 %v434
  %853 = vmatpush2.msra.mxu0 %v433
  %854 = vmatprep.subr.mxu0 %v427
  %855 = vmatpush2.msra.mxu0 %v426
  %856 = vmatprep.subr.mxu0 %v420
  %857 = vmatpush2.msra.mxu0 %v419
  %858 = vmatprep.subr.mxu0 %v413
  %859 = vmatpush2.msra.mxu0 %v412
  %860 = vmatprep.subr.mxu0 %v406
  %861 = vmatpush2.msra.mxu0 %v405
  %862 = vmatprep.subr.mxu0 %v399
  %863 = vmatpush2.msra.mxu0 %v398
  %864 = vmatprep.subr.mxu0 %v392
  %865 = vmatpush2.msra.mxu0 %v391
  %866 = vmatprep.subr.mxu0 %v385
  %867 = vmatpush2.msra.mxu0 %v384
  %868 = vmatprep.subr.mxu0 %v378
  %869 = vmatpush2.msra.mxu0 %v377
  %870 = vmatprep.subr.mxu0 %v371
  %871 = vmatpush2.msra.mxu0 %v370
  %872 = vmatprep.subr.mxu0 %v364
  %873 = vmatpush2.msra.mxu0 %v363
  %874 = vmatprep.subr.mxu0 %v357
  %875 = vmatpush2.msra.mxu0 %v356
  %876 = vmatprep.subr.mxu0 %v350
  %877 = vmatpush2.msra.mxu0 %v349
  %878 = vmatprep.mubr.f32.mxu0 %v717
  %879 = vmatmul.mubr.f32.gmra.mxu0 %v715
  %v880 = vpop.f32.mrf.mxu0
  %v881 = vadd.f32 %v810, %v880
  %v882 = vpop.f32.mrf.mxu0
  %v883 = vadd.f32 %v812, %v882
  %884 = vdwg.mxu0
  %885 = vmatprep.subr.mxu0 %v567
  %886 = vmatpush1.msra.mxu0 %v566
  %887 = vmatprep.subr.mxu0 %v560
  %888 = vmatpush1.msra.mxu0 %v559
  %889 = vmatprep.subr.mxu0 %v553
  %890 = vmatpush1.msra.mxu0 %v552
  %891 = vmatprep.subr.mxu0 %v546
  %892 = vmatpush1.msra.mxu0 %v545
  %893 = vmatprep.subr.mxu0 %v539
  %894 = vmatpush1.msra.mxu0 %v538
  %895 = vmatprep.subr.mxu0 %v532
  %896 = vmatpush1.msra.mxu0 %v531
  %897 = vmatprep.subr.mxu0 %v525
  %898 = vmatpush1.msra.mxu0 %v524
  %899 = vmatprep.subr.mxu0 %v518
  %900 = vmatpush1.msra.mxu0 %v517
  %901 = vmatprep.subr.mxu0 %v511
  %902 = vmatpush1.msra.mxu0 %v510
  %903 = vmatprep.subr.mxu0 %v504
  %904 = vmatpush1.msra.mxu0 %v503
  %905 = vmatprep.subr.mxu0 %v497
  %906 = vmatpush1.msra.mxu0 %v496
  %907 = vmatprep.subr.mxu0 %v490
  %908 = vmatpush1.msra.mxu0 %v489
  %909 = vmatprep.subr.mxu0 %v483
  %910 = vmatpush1.msra.mxu0 %v482
  %911 = vmatprep.subr.mxu0 %v476
  %912 = vmatpush1.msra.mxu0 %v475
  %913 = vmatprep.subr.mxu0 %v469
  %914 = vmatpush1.msra.mxu0 %v468
  %915 = vmatprep.subr.mxu0 %v462
  %916 = vmatpush1.msra.mxu0 %v461
  %917 = vmatprep.subr.mxu0 %v679
  %918 = vmatpush2.msra.mxu0 %v678
  %919 = vmatprep.subr.mxu0 %v672
  %920 = vmatpush2.msra.mxu0 %v671
  %921 = vmatprep.subr.mxu0 %v665
  %922 = vmatpush2.msra.mxu0 %v664
  %923 = vmatprep.subr.mxu0 %v658
  %924 = vmatpush2.msra.mxu0 %v657
  %925 = vmatprep.subr.mxu0 %v651
  %926 = vmatpush2.msra.mxu0 %v650
  %927 = vmatprep.subr.mxu0 %v644
  %928 = vmatpush2.msra.mxu0 %v643
  %929 = vmatprep.subr.mxu0 %v637
  %930 = vmatpush2.msra.mxu0 %v636
  %931 = vmatprep.subr.mxu0 %v630
  %932 = vmatpush2.msra.mxu0 %v629
  %933 = vmatprep.subr.mxu0 %v623
  %934 = vmatpush2.msra.mxu0 %v622
  %935 = vmatprep.subr.mxu0 %v616
  %936 = vmatpush2.msra.mxu0 %v615
  %937 = vmatprep.subr.mxu0 %v609
  %938 = vmatpush2.msra.mxu0 %v608
  %939 = vmatprep.subr.mxu0 %v602
  %940 = vmatpush2.msra.mxu0 %v601
  %941 = vmatprep.subr.mxu0 %v595
  %942 = vmatpush2.msra.mxu0 %v594
  %943 = vmatprep.subr.mxu0 %v588
  %944 = vmatpush2.msra.mxu0 %v587
  %945 = vmatprep.subr.mxu0 %v581
  %946 = vmatpush2.msra.mxu0 %v580
  %947 = vmatprep.subr.mxu0 %v574
  %948 = vmatpush2.msra.mxu0 %v573
  %949 = vmatprep.mubr.f32.mxu0 %v733
  %950 = vmatmul.mubr.f32.gmra.mxu0 %v725
  %v951 = vpop.f32.mrf.mxu0
  %v952 = vadd.f32 %v881, %v951
  %v953 = vpop.f32.mrf.mxu0
  %v954 = vadd.f32 %v883, %v953
  %955 = vdwg.mxu0
  %956 = vmatprep.subr.mxu0 0.0
  %957 = vmatpush1.msra.mxu0 0.0
  %958 = vmatprep.subr.mxu0 0.0
  %959 = vmatpush1.msra.mxu0 0.0
  %960 = vmatprep.subr.mxu0 0.0
  %961 = vmatpush1.msra.mxu0 0.0
  %962 = vmatprep.subr.mxu0 0.0
  %963 = vmatpush1.msra.mxu0 0.0
  %964 = vmatprep.subr.mxu0 0.0
  %965 = vmatpush1.msra.mxu0 0.0
  %966 = vmatprep.subr.mxu0 0.0
  %967 = vmatpush1.msra.mxu0 0.0
  %968 = vmatprep.subr.mxu0 0.0
  %969 = vmatpush1.msra.mxu0 0.0
  %970 = vmatprep.subr.mxu0 0.0
  %971 = vmatpush1.msra.mxu0 0.0
  %972 = vmatprep.subr.mxu0 0.0
  %973 = vmatpush1.msra.mxu0 0.0
  %974 = vmatprep.subr.mxu0 0.0
  %975 = vmatpush1.msra.mxu0 0.0
  %976 = vmatprep.subr.mxu0 0.0
  %977 = vmatpush1.msra.mxu0 0.0
  %978 = vmatprep.subr.mxu0 0.0
  %979 = vmatpush1.msra.mxu0 0.0
  %980 = vmatprep.subr.mxu0 0.0
  %981 = vmatpush1.msra.mxu0 0.0
  %982 = vmatprep.subr.mxu0 0.0
  %983 = vmatpush1.msra.mxu0 0.0
  %984 = vmatprep.subr.mxu0 %v693
  %985 = vmatpush1.msra.mxu0 %v692
  %986 = vmatprep.subr.mxu0 %v686
  %987 = vmatpush1.msra.mxu0 %v685
  %988 = vmatprep.subr.mxu0 0.0
  %989 = vmatpush2.msra.mxu0 0.0
  %990 = vmatprep.subr.mxu0 0.0
  %991 = vmatpush2.msra.mxu0 0.0
  %992 = vmatprep.subr.mxu0 0.0
  %993 = vmatpush2.msra.mxu0 0.0
  %994 = vmatprep.subr.mxu0 0.0
  %995 = vmatpush2.msra.mxu0 0.0
  %996 = vmatprep.subr.mxu0 0.0
  %997 = vmatpush2.msra.mxu0 0.0
  %998 = vmatprep.subr.mxu0 0.0
  %999 = vmatpush2.msra.mxu0 0.0
  %1000 = vmatprep.subr.mxu0 0.0
  %1001 = vmatpush2.msra.mxu0 0.0
  %1002 = vmatprep.subr.mxu0 0.0
  %1003 = vmatpush2.msra.mxu0 0.0
  %1004 = vmatprep.subr.mxu0 0.0
  %1005 = vmatpush2.msra.mxu0 0.0
  %1006 = vmatprep.subr.mxu0 0.0
  %1007 = vmatpush2.msra.mxu0 0.0
  %1008 = vmatprep.subr.mxu0 0.0
  %1009 = vmatpush2.msra.mxu0 0.0
  %1010 = vmatprep.subr.mxu0 0.0
  %1011 = vmatpush2.msra.mxu0 0.0
  %1012 = vmatprep.subr.mxu0 0.0
  %1013 = vmatpush2.msra.mxu0 0.0
  %1014 = vmatprep.subr.mxu0 0.0
  %1015 = vmatpush2.msra.mxu0 0.0
  %1016 = vmatprep.subr.mxu0 0.0
  %1017 = vmatpush2.msra.mxu0 0.0
  %1018 = vmatprep.subr.mxu0 0.0
  %1019 = vmatpush2.msra.mxu0 0.0
  %1020 = vmatprep.mubr.f32.mxu0 0.0
  %1021 = vmatmul.mubr.f32.gmra.mxu0 %v741
  %v1022 = vpop.f32.mrf.mxu0
  %v1023 = vadd.f32 %v952, %v1022
  %v1024 = vpop.f32.mrf.mxu0
  %v1025 = vadd.f32 %v954, %v1024
  %1026 = vdwg.mxu0
  %1027 = vmatprep.subr.mxu0 %v121
  %1028 = vmatpush1.msra.mxu0 %v120
  %1029 = vmatprep.subr.mxu0 %v114
  %1030 = vmatpush1.msra.mxu0 %v113
  %1031 = vmatprep.subr.mxu0 %v107
  %1032 = vmatpush1.msra.mxu0 %v106
  %1033 = vmatprep.subr.mxu0 %v100
  %1034 = vmatpush1.msra.mxu0 %v99
  %1035 = vmatprep.subr.mxu0 %v93
  %1036 = vmatpush1.msra.mxu0 %v92
  %1037 = vmatprep.subr.mxu0 %v86
  %1038 = vmatpush1.msra.mxu0 %v85
  %1039 = vmatprep.subr.mxu0 %v79
  %1040 = vmatpush1.msra.mxu0 %v78
  %1041 = vmatprep.subr.mxu0 %v72
  %1042 = vmatpush1.msra.mxu0 %v71
  %1043 = vmatprep.subr.mxu0 %v65
  %1044 = vmatpush1.msra.mxu0 %v64
  %1045 = vmatprep.subr.mxu0 %v58
  %1046 = vmatpush1.msra.mxu0 %v57
  %1047 = vmatprep.subr.mxu0 %v51
  %1048 = vmatpush1.msra.mxu0 %v50
  %1049 = vmatprep.subr.mxu0 %v44
  %1050 = vmatpush1.msra.mxu0 %v43
  %1051 = vmatprep.subr.mxu0 %v37
  %1052 = vmatpush1.msra.mxu0 %v36
  %1053 = vmatprep.subr.mxu0 %v30
  %1054 = vmatpush1.msra.mxu0 %v29
  %1055 = vmatprep.subr.mxu0 %v23
  %1056 = vmatpush1.msra.mxu0 %v22
  %1057 = vmatprep.subr.mxu0 %v16
  %1058 = vmatpush1.msra.mxu0 %v15
  %1059 = vmatprep.subr.mxu0 %v233
  %1060 = vmatpush2.msra.mxu0 %v232
  %1061 = vmatprep.subr.mxu0 %v226
  %1062 = vmatpush2.msra.mxu0 %v225
  %1063 = vmatprep.subr.mxu0 %v219
  %1064 = vmatpush2.msra.mxu0 %v218
  %1065 = vmatprep.subr.mxu0 %v212
  %1066 = vmatpush2.msra.mxu0 %v211
  %1067 = vmatprep.subr.mxu0 %v205
  %1068 = vmatpush2.msra.mxu0 %v204
  %1069 = vmatprep.subr.mxu0 %v198
  %1070 = vmatpush2.msra.mxu0 %v197
  %1071 = vmatprep.subr.mxu0 %v191
  %1072 = vmatpush2.msra.mxu0 %v190
  %1073 = vmatprep.subr.mxu0 %v184
  %1074 = vmatpush2.msra.mxu0 %v183
  %1075 = vmatprep.subr.mxu0 %v177
  %1076 = vmatpush2.msra.mxu0 %v176
  %1077 = vmatprep.subr.mxu0 %v170
  %1078 = vmatpush2.msra.mxu0 %v169
  %1079 = vmatprep.subr.mxu0 %v163
  %1080 = vmatpush2.msra.mxu0 %v162
  %1081 = vmatprep.subr.mxu0 %v156
  %1082 = vmatpush2.msra.mxu0 %v155
  %1083 = vmatprep.subr.mxu0 %v149
  %1084 = vmatpush2.msra.mxu0 %v148
  %1085 = vmatprep.subr.mxu0 %v142
  %1086 = vmatpush2.msra.mxu0 %v141
  %1087 = vmatprep.subr.mxu0 %v135
  %1088 = vmatpush2.msra.mxu0 %v134
  %1089 = vmatprep.subr.mxu0 %v128
  %1090 = vmatpush2.msra.mxu0 %v127
  %1091 = vmatprep.mubr.f32.mxu0 %v716
  %1092 = vmatmul.mubr.f32.gmra.mxu0 %v708
  %v1093 = vpop.f32.mrf.mxu0
  %v1094 = vadd.f32 0.0, %v1093
  %v1095 = vpop.f32.mrf.mxu0
  %v1096 = vadd.f32 0.0, %v1095
  %1097 = vdwg.mxu0
  %1098 = vmatprep.subr.mxu0 %v345
  %1099 = vmatpush1.msra.mxu0 %v344
  %1100 = vmatprep.subr.mxu0 %v338
  %1101 = vmatpush1.msra.mxu0 %v337
  %1102 = vmatprep.subr.mxu0 %v331
  %1103 = vmatpush1.msra.mxu0 %v330
  %1104 = vmatprep.subr.mxu0 %v324
  %1105 = vmatpush1.msra.mxu0 %v323
  %1106 = vmatprep.subr.mxu0 %v317
  %1107 = vmatpush1.msra.mxu0 %v316
  %1108 = vmatprep.subr.mxu0 %v310
  %1109 = vmatpush1.msra.mxu0 %v309
  %1110 = vmatprep.subr.mxu0 %v303
  %1111 = vmatpush1.msra.mxu0 %v302
  %1112 = vmatprep.subr.mxu0 %v296
  %1113 = vmatpush1.msra.mxu0 %v295
  %1114 = vmatprep.subr.mxu0 %v289
  %1115 = vmatpush1.msra.mxu0 %v288
  %1116 = vmatprep.subr.mxu0 %v282
  %1117 = vmatpush1.msra.mxu0 %v281
  %1118 = vmatprep.subr.mxu0 %v275
  %1119 = vmatpush1.msra.mxu0 %v274
  %1120 = vmatprep.subr.mxu0 %v268
  %1121 = vmatpush1.msra.mxu0 %v267
  %1122 = vmatprep.subr.mxu0 %v261
  %1123 = vmatpush1.msra.mxu0 %v260
  %1124 = vmatprep.subr.mxu0 %v254
  %1125 = vmatpush1.msra.mxu0 %v253
  %1126 = vmatprep.subr.mxu0 %v247
  %1127 = vmatpush1.msra.mxu0 %v246
  %1128 = vmatprep.subr.mxu0 %v240
  %1129 = vmatpush1.msra.mxu0 %v239
  %1130 = vmatprep.subr.mxu0 %v457
  %1131 = vmatpush2.msra.mxu0 %v456
  %1132 = vmatprep.subr.mxu0 %v450
  %1133 = vmatpush2.msra.mxu0 %v449
  %1134 = vmatprep.subr.mxu0 %v443
  %1135 = vmatpush2.msra.mxu0 %v442
  %1136 = vmatprep.subr.mxu0 %v436
  %1137 = vmatpush2.msra.mxu0 %v435
  %1138 = vmatprep.subr.mxu0 %v429
  %1139 = vmatpush2.msra.mxu0 %v428
  %1140 = vmatprep.subr.mxu0 %v422
  %1141 = vmatpush2.msra.mxu0 %v421
  %1142 = vmatprep.subr.mxu0 %v415
  %1143 = vmatpush2.msra.mxu0 %v414
  %1144 = vmatprep.subr.mxu0 %v408
  %1145 = vmatpush2.msra.mxu0 %v407
  %1146 = vmatprep.subr.mxu0 %v401
  %1147 = vmatpush2.msra.mxu0 %v400
  %1148 = vmatprep.subr.mxu0 %v394
  %1149 = vmatpush2.msra.mxu0 %v393
  %1150 = vmatprep.subr.mxu0 %v387
  %1151 = vmatpush2.msra.mxu0 %v386
  %1152 = vmatprep.subr.mxu0 %v380
  %1153 = vmatpush2.msra.mxu0 %v379
  %1154 = vmatprep.subr.mxu0 %v373
  %1155 = vmatpush2.msra.mxu0 %v372
  %1156 = vmatprep.subr.mxu0 %v366
  %1157 = vmatpush2.msra.mxu0 %v365
  %1158 = vmatprep.subr.mxu0 %v359
  %1159 = vmatpush2.msra.mxu0 %v358
  %1160 = vmatprep.subr.mxu0 %v352
  %1161 = vmatpush2.msra.mxu0 %v351
  %1162 = vmatprep.mubr.f32.mxu0 %v717
  %1163 = vmatmul.mubr.f32.gmra.mxu0 %v715
  %v1164 = vpop.f32.mrf.mxu0
  %v1165 = vadd.f32 %v1094, %v1164
  %v1166 = vpop.f32.mrf.mxu0
  %v1167 = vadd.f32 %v1096, %v1166
  %1168 = vdwg.mxu0
  %1169 = vmatprep.subr.mxu0 %v569
  %1170 = vmatpush1.msra.mxu0 %v568
  %1171 = vmatprep.subr.mxu0 %v562
  %1172 = vmatpush1.msra.mxu0 %v561
  %1173 = vmatprep.subr.mxu0 %v555
  %1174 = vmatpush1.msra.mxu0 %v554
  %1175 = vmatprep.subr.mxu0 %v548
  %1176 = vmatpush1.msra.mxu0 %v547
  %1177 = vmatprep.subr.mxu0 %v541
  %1178 = vmatpush1.msra.mxu0 %v540
  %1179 = vmatprep.subr.mxu0 %v534
  %1180 = vmatpush1.msra.mxu0 %v533
  %1181 = vmatprep.subr.mxu0 %v527
  %1182 = vmatpush1.msra.mxu0 %v526
  %1183 = vmatprep.subr.mxu0 %v520
  %1184 = vmatpush1.msra.mxu0 %v519
  %1185 = vmatprep.subr.mxu0 %v513
  %1186 = vmatpush1.msra.mxu0 %v512
  %1187 = vmatprep.subr.mxu0 %v506
  %1188 = vmatpush1.msra.mxu0 %v505
  %1189 = vmatprep.subr.mxu0 %v499
  %1190 = vmatpush1.msra.mxu0 %v498
  %1191 = vmatprep.subr.mxu0 %v492
  %1192 = vmatpush1.msra.mxu0 %v491
  %1193 = vmatprep.subr.mxu0 %v485
  %1194 = vmatpush1.msra.mxu0 %v484
  %1195 = vmatprep.subr.mxu0 %v478
  %1196 = vmatpush1.msra.mxu0 %v477
  %1197 = vmatprep.subr.mxu0 %v471
  %1198 = vmatpush1.msra.mxu0 %v470
  %1199 = vmatprep.subr.mxu0 %v464
  %1200 = vmatpush1.msra.mxu0 %v463
  %1201 = vmatprep.subr.mxu0 %v681
  %1202 = vmatpush2.msra.mxu0 %v680
  %1203 = vmatprep.subr.mxu0 %v674
  %1204 = vmatpush2.msra.mxu0 %v673
  %1205 = vmatprep.subr.mxu0 %v667
  %1206 = vmatpush2.msra.mxu0 %v666
  %1207 = vmatprep.subr.mxu0 %v660
  %1208 = vmatpush2.msra.mxu0 %v659
  %1209 = vmatprep.subr.mxu0 %v653
  %1210 = vmatpush2.msra.mxu0 %v652
  %1211 = vmatprep.subr.mxu0 %v646
  %1212 = vmatpush2.msra.mxu0 %v645
  %1213 = vmatprep.subr.mxu0 %v639
  %1214 = vmatpush2.msra.mxu0 %v638
  %1215 = vmatprep.subr.mxu0 %v632
  %1216 = vmatpush2.msra.mxu0 %v631
  %1217 = vmatprep.subr.mxu0 %v625
  %1218 = vmatpush2.msra.mxu0 %v624
  %1219 = vmatprep.subr.mxu0 %v618
  %1220 = vmatpush2.msra.mxu0 %v617
  %1221 = vmatprep.subr.mxu0 %v611
  %1222 = vmatpush2.msra.mxu0 %v610
  %1223 = vmatprep.subr.mxu0 %v604
  %1224 = vmatpush2.msra.mxu0 %v603
  %1225 = vmatprep.subr.mxu0 %v597
  %1226 = vmatpush2.msra.mxu0 %v596
  %1227 = vmatprep.subr.mxu0 %v590
  %1228 = vmatpush2.msra.mxu0 %v589
  %1229 = vmatprep.subr.mxu0 %v583
  %1230 = vmatpush2.msra.mxu0 %v582
  %1231 = vmatprep.subr.mxu0 %v576
  %1232 = vmatpush2.msra.mxu0 %v575
  %1233 = vmatprep.mubr.f32.mxu0 %v733
  %1234 = vmatmul.mubr.f32.gmra.mxu0 %v725
  %v1235 = vpop.f32.mrf.mxu0
  %v1236 = vadd.f32 %v1165, %v1235
  %v1237 = vpop.f32.mrf.mxu0
  %v1238 = vadd.f32 %v1167, %v1237
  %1239 = vdwg.mxu0
  %1240 = vmatprep.subr.mxu0 0.0
  %1241 = vmatpush1.msra.mxu0 0.0
  %1242 = vmatprep.subr.mxu0 0.0
  %1243 = vmatpush1.msra.mxu0 0.0
  %1244 = vmatprep.subr.mxu0 0.0
  %1245 = vmatpush1.msra.mxu0 0.0
  %1246 = vmatprep.subr.mxu0 0.0
  %1247 = vmatpush1.msra.mxu0 0.0
  %1248 = vmatprep.subr.mxu0 0.0
  %1249 = vmatpush1.msra.mxu0 0.0
  %1250 = vmatprep.subr.mxu0 0.0
  %1251 = vmatpush1.msra.mxu0 0.0
  %1252 = vmatprep.subr.mxu0 0.0
  %1253 = vmatpush1.msra.mxu0 0.0
  %1254 = vmatprep.subr.mxu0 0.0
  %1255 = vmatpush1.msra.mxu0 0.0
  %1256 = vmatprep.subr.mxu0 0.0
  %1257 = vmatpush1.msra.mxu0 0.0
  %1258 = vmatprep.subr.mxu0 0.0
  %1259 = vmatpush1.msra.mxu0 0.0
  %1260 = vmatprep.subr.mxu0 0.0
  %1261 = vmatpush1.msra.mxu0 0.0
  %1262 = vmatprep.subr.mxu0 0.0
  %1263 = vmatpush1.msra.mxu0 0.0
  %1264 = vmatprep.subr.mxu0 0.0
  %1265 = vmatpush1.msra.mxu0 0.0
  %1266 = vmatprep.subr.mxu0 0.0
  %1267 = vmatpush1.msra.mxu0 0.0
  %1268 = vmatprep.subr.mxu0 %v695
  %1269 = vmatpush1.msra.mxu0 %v694
  %1270 = vmatprep.subr.mxu0 %v688
  %1271 = vmatpush1.msra.mxu0 %v687
  %1272 = vmatprep.subr.mxu0 0.0
  %1273 = vmatpush2.msra.mxu0 0.0
  %1274 = vmatprep.subr.mxu0 0.0
  %1275 = vmatpush2.msra.mxu0 0.0
  %1276 = vmatprep.subr.mxu0 0.0
  %1277 = vmatpush2.msra.mxu0 0.0
  %1278 = vmatprep.subr.mxu0 0.0
  %1279 = vmatpush2.msra.mxu0 0.0
  %1280 = vmatprep.subr.mxu0 0.0
  %1281 = vmatpush2.msra.mxu0 0.0
  %1282 = vmatprep.subr.mxu0 0.0
  %1283 = vmatpush2.msra.mxu0 0.0
  %1284 = vmatprep.subr.mxu0 0.0
  %1285 = vmatpush2.msra.mxu0 0.0
  %1286 = vmatprep.subr.mxu0 0.0
  %1287 = vmatpush2.msra.mxu0 0.0
  %1288 = vmatprep.subr.mxu0 0.0
  %1289 = vmatpush2.msra.mxu0 0.0
  %1290 = vmatprep.subr.mxu0 0.0
  %1291 = vmatpush2.msra.mxu0 0.0
  %1292 = vmatprep.subr.mxu0 0.0
  %1293 = vmatpush2.msra.mxu0 0.0
  %1294 = vmatprep.subr.mxu0 0.0
  %1295 = vmatpush2.msra.mxu0 0.0
  %1296 = vmatprep.subr.mxu0 0.0
  %1297 = vmatpush2.msra.mxu0 0.0
  %1298 = vmatprep.subr.mxu0 0.0
  %1299 = vmatpush2.msra.mxu0 0.0
  %1300 = vmatprep.subr.mxu0 0.0
  %1301 = vmatpush2.msra.mxu0 0.0
  %1302 = vmatprep.subr.mxu0 0.0
  %1303 = vmatpush2.msra.mxu0 0.0
  %1304 = vmatprep.mubr.f32.mxu0 0.0
  %1305 = vmatmul.mubr.f32.gmra.mxu0 %v741
  %v1306 = vpop.f32.mrf.mxu0
  %v1307 = vadd.f32 %v1236, %v1306
  %v1308 = vpop.f32.mrf.mxu0
  %v1309 = vadd.f32 %v1238, %v1308
  %1310 = vdwg.mxu0
  %1311 = vmatprep.subr.mxu0 %v123
  %1312 = vmatpush1.msra.mxu0 %v122
  %1313 = vmatprep.subr.mxu0 %v116
  %1314 = vmatpush1.msra.mxu0 %v115
  %1315 = vmatprep.subr.mxu0 %v109
  %1316 = vmatpush1.msra.mxu0 %v108
  %1317 = vmatprep.subr.mxu0 %v102
  %1318 = vmatpush1.msra.mxu0 %v101
  %1319 = vmatprep.subr.mxu0 %v95
  %1320 = vmatpush1.msra.mxu0 %v94
  %1321 = vmatprep.subr.mxu0 %v88
  %1322 = vmatpush1.msra.mxu0 %v87
  %1323 = vmatprep.subr.mxu0 %v81
  %1324 = vmatpush1.msra.mxu0 %v80
  %1325 = vmatprep.subr.mxu0 %v74
  %1326 = vmatpush1.msra.mxu0 %v73
  %1327 = vmatprep.subr.mxu0 %v67
  %1328 = vmatpush1.msra.mxu0 %v66
  %1329 = vmatprep.subr.mxu0 %v60
  %1330 = vmatpush1.msra.mxu0 %v59
  %1331 = vmatprep.subr.mxu0 %v53
  %1332 = vmatpush1.msra.mxu0 %v52
  %1333 = vmatprep.subr.mxu0 %v46
  %1334 = vmatpush1.msra.mxu0 %v45
  %1335 = vmatprep.subr.mxu0 %v39
  %1336 = vmatpush1.msra.mxu0 %v38
  %1337 = vmatprep.subr.mxu0 %v32
  %1338 = vmatpush1.msra.mxu0 %v31
  %1339 = vmatprep.subr.mxu0 %v25
  %1340 = vmatpush1.msra.mxu0 %v24
  %1341 = vmatprep.subr.mxu0 %v18
  %1342 = vmatpush1.msra.mxu0 %v17
  %1343 = vmatprep.subr.mxu0 %v235
  %1344 = vmatpush2.msra.mxu0 %v234
  %1345 = vmatprep.subr.mxu0 %v228
  %1346 = vmatpush2.msra.mxu0 %v227
  %1347 = vmatprep.subr.mxu0 %v221
  %1348 = vmatpush2.msra.mxu0 %v220
  %1349 = vmatprep.subr.mxu0 %v214
  %1350 = vmatpush2.msra.mxu0 %v213
  %1351 = vmatprep.subr.mxu0 %v207
  %1352 = vmatpush2.msra.mxu0 %v206
  %1353 = vmatprep.subr.mxu0 %v200
  %1354 = vmatpush2.msra.mxu0 %v199
  %1355 = vmatprep.subr.mxu0 %v193
  %1356 = vmatpush2.msra.mxu0 %v192
  %1357 = vmatprep.subr.mxu0 %v186
  %1358 = vmatpush2.msra.mxu0 %v185
  %1359 = vmatprep.subr.mxu0 %v179
  %1360 = vmatpush2.msra.mxu0 %v178
  %1361 = vmatprep.subr.mxu0 %v172
  %1362 = vmatpush2.msra.mxu0 %v171
  %1363 = vmatprep.subr.mxu0 %v165
  %1364 = vmatpush2.msra.mxu0 %v164
  %1365 = vmatprep.subr.mxu0 %v158
  %1366 = vmatpush2.msra.mxu0 %v157
  %1367 = vmatprep.subr.mxu0 %v151
  %1368 = vmatpush2.msra.mxu0 %v150
  %1369 = vmatprep.subr.mxu0 %v144
  %1370 = vmatpush2.msra.mxu0 %v143
  %1371 = vmatprep.subr.mxu0 %v137
  %1372 = vmatpush2.msra.mxu0 %v136
  %1373 = vmatprep.subr.mxu0 %v130
  %1374 = vmatpush2.msra.mxu0 %v129
  %1375 = vmatprep.mubr.f32.mxu0 %v716
  %1376 = vmatmul.mubr.f32.gmra.mxu0 %v708
  %v1377 = vpop.f32.mrf.mxu0
  %v1378 = vadd.f32 0.0, %v1377
  %v1379 = vpop.f32.mrf.mxu0
  %v1380 = vadd.f32 0.0, %v1379
  %1381 = vdwg.mxu0
  %1382 = vmatprep.subr.mxu0 %v347
  %1383 = vmatpush1.msra.mxu0 %v346
  %1384 = vmatprep.subr.mxu0 %v340
  %1385 = vmatpush1.msra.mxu0 %v339
  %1386 = vmatprep.subr.mxu0 %v333
  %1387 = vmatpush1.msra.mxu0 %v332
  %1388 = vmatprep.subr.mxu0 %v326
  %1389 = vmatpush1.msra.mxu0 %v325
  %1390 = vmatprep.subr.mxu0 %v319
  %1391 = vmatpush1.msra.mxu0 %v318
  %1392 = vmatprep.subr.mxu0 %v312
  %1393 = vmatpush1.msra.mxu0 %v311
  %1394 = vmatprep.subr.mxu0 %v305
  %1395 = vmatpush1.msra.mxu0 %v304
  %1396 = vmatprep.subr.mxu0 %v298
  %1397 = vmatpush1.msra.mxu0 %v297
  %1398 = vmatprep.subr.mxu0 %v291
  %1399 = vmatpush1.msra.mxu0 %v290
  %1400 = vmatprep.subr.mxu0 %v284
  %1401 = vmatpush1.msra.mxu0 %v283
  %1402 = vmatprep.subr.mxu0 %v277
  %1403 = vmatpush1.msra.mxu0 %v276
  %1404 = vmatprep.subr.mxu0 %v270
  %1405 = vmatpush1.msra.mxu0 %v269
  %1406 = vmatprep.subr.mxu0 %v263
  %1407 = vmatpush1.msra.mxu0 %v262
  %1408 = vmatprep.subr.mxu0 %v256
  %1409 = vmatpush1.msra.mxu0 %v255
  %1410 = vmatprep.subr.mxu0 %v249
  %1411 = vmatpush1.msra.mxu0 %v248
  %1412 = vmatprep.subr.mxu0 %v242
  %1413 = vmatpush1.msra.mxu0 %v241
  %1414 = vmatprep.subr.mxu0 %v459
  %1415 = vmatpush2.msra.mxu0 %v458
  %1416 = vmatprep.subr.mxu0 %v452
  %1417 = vmatpush2.msra.mxu0 %v451
  %1418 = vmatprep.subr.mxu0 %v445
  %1419 = vmatpush2.msra.mxu0 %v444
  %1420 = vmatprep.subr.mxu0 %v438
  %1421 = vmatpush2.msra.mxu0 %v437
  %1422 = vmatprep.subr.mxu0 %v431
  %1423 = vmatpush2.msra.mxu0 %v430
  %1424 = vmatprep.subr.mxu0 %v424
  %1425 = vmatpush2.msra.mxu0 %v423
  %1426 = vmatprep.subr.mxu0 %v417
  %1427 = vmatpush2.msra.mxu0 %v416
  %1428 = vmatprep.subr.mxu0 %v410
  %1429 = vmatpush2.msra.mxu0 %v409
  %1430 = vmatprep.subr.mxu0 %v403
  %1431 = vmatpush2.msra.mxu0 %v402
  %1432 = vmatprep.subr.mxu0 %v396
  %1433 = vmatpush2.msra.mxu0 %v395
  %1434 = vmatprep.subr.mxu0 %v389
  %1435 = vmatpush2.msra.mxu0 %v388
  %1436 = vmatprep.subr.mxu0 %v382
  %1437 = vmatpush2.msra.mxu0 %v381
  %1438 = vmatprep.subr.mxu0 %v375
  %1439 = vmatpush2.msra.mxu0 %v374
  %1440 = vmatprep.subr.mxu0 %v368
  %1441 = vmatpush2.msra.mxu0 %v367
  %1442 = vmatprep.subr.mxu0 %v361
  %1443 = vmatpush2.msra.mxu0 %v360
  %1444 = vmatprep.subr.mxu0 %v354
  %1445 = vmatpush2.msra.mxu0 %v353
  %1446 = vmatprep.mubr.f32.mxu0 %v717
  %1447 = vmatmul.mubr.f32.gmra.mxu0 %v715
  %v1448 = vpop.f32.mrf.mxu0
  %v1449 = vadd.f32 %v1378, %v1448
  %v1450 = vpop.f32.mrf.mxu0
  %v1451 = vadd.f32 %v1380, %v1450
  %1452 = vdwg.mxu0
  %1453 = vmatprep.subr.mxu0 %v571
  %1454 = vmatpush1.msra.mxu0 %v570
  %1455 = vmatprep.subr.mxu0 %v564
  %1456 = vmatpush1.msra.mxu0 %v563
  %1457 = vmatprep.subr.mxu0 %v557
  %1458 = vmatpush1.msra.mxu0 %v556
  %1459 = vmatprep.subr.mxu0 %v550
  %1460 = vmatpush1.msra.mxu0 %v549
  %1461 = vmatprep.subr.mxu0 %v543
  %1462 = vmatpush1.msra.mxu0 %v542
  %1463 = vmatprep.subr.mxu0 %v536
  %1464 = vmatpush1.msra.mxu0 %v535
  %1465 = vmatprep.subr.mxu0 %v529
  %1466 = vmatpush1.msra.mxu0 %v528
  %1467 = vmatprep.subr.mxu0 %v522
  %1468 = vmatpush1.msra.mxu0 %v521
  %1469 = vmatprep.subr.mxu0 %v515
  %1470 = vmatpush1.msra.mxu0 %v514
  %1471 = vmatprep.subr.mxu0 %v508
  %1472 = vmatpush1.msra.mxu0 %v507
  %1473 = vmatprep.subr.mxu0 %v501
  %1474 = vmatpush1.msra.mxu0 %v500
  %1475 = vmatprep.subr.mxu0 %v494
  %1476 = vmatpush1.msra.mxu0 %v493
  %1477 = vmatprep.subr.mxu0 %v487
  %1478 = vmatpush1.msra.mxu0 %v486
  %1479 = vmatprep.subr.mxu0 %v480
  %1480 = vmatpush1.msra.mxu0 %v479
  %1481 = vmatprep.subr.mxu0 %v473
  %1482 = vmatpush1.msra.mxu0 %v472
  %1483 = vmatprep.subr.mxu0 %v466
  %1484 = vmatpush1.msra.mxu0 %v465
  %1485 = vmatprep.subr.mxu0 %v683
  %1486 = vmatpush2.msra.mxu0 %v682
  %1487 = vmatprep.subr.mxu0 %v676
  %1488 = vmatpush2.msra.mxu0 %v675
  %1489 = vmatprep.subr.mxu0 %v669
  %1490 = vmatpush2.msra.mxu0 %v668
  %1491 = vmatprep.subr.mxu0 %v662
  %1492 = vmatpush2.msra.mxu0 %v661
  %1493 = vmatprep.subr.mxu0 %v655
  %1494 = vmatpush2.msra.mxu0 %v654
  %1495 = vmatprep.subr.mxu0 %v648
  %1496 = vmatpush2.msra.mxu0 %v647
  %1497 = vmatprep.subr.mxu0 %v641
  %1498 = vmatpush2.msra.mxu0 %v640
  %1499 = vmatprep.subr.mxu0 %v634
  %1500 = vmatpush2.msra.mxu0 %v633
  %1501 = vmatprep.subr.mxu0 %v627
  %1502 = vmatpush2.msra.mxu0 %v626
  %1503 = vmatprep.subr.mxu0 %v620
  %1504 = vmatpush2.msra.mxu0 %v619
  %1505 = vmatprep.subr.mxu0 %v613
  %1506 = vmatpush2.msra.mxu0 %v612
  %1507 = vmatprep.subr.mxu0 %v606
  %1508 = vmatpush2.msra.mxu0 %v605
  %1509 = vmatprep.subr.mxu0 %v599
  %1510 = vmatpush2.msra.mxu0 %v598
  %1511 = vmatprep.subr.mxu0 %v592
  %1512 = vmatpush2.msra.mxu0 %v591
  %1513 = vmatprep.subr.mxu0 %v585
  %1514 = vmatpush2.msra.mxu0 %v584
  %1515 = vmatprep.subr.mxu0 %v578
  %1516 = vmatpush2.msra.mxu0 %v577
  %1517 = vmatprep.mubr.f32.mxu0 %v733
  %1518 = vmatmul.mubr.f32.gmra.mxu0 %v725
  %v1519 = vpop.f32.mrf.mxu0
  %v1520 = vadd.f32 %v1449, %v1519
  %v1521 = vpop.f32.mrf.mxu0
  %v1522 = vadd.f32 %v1451, %v1521
  %1523 = vdwg.mxu0
  %1524 = vmatprep.subr.mxu0 0.0
  %1525 = vmatpush1.msra.mxu0 0.0
  %1526 = vmatprep.subr.mxu0 0.0
  %1527 = vmatpush1.msra.mxu0 0.0
  %1528 = vmatprep.subr.mxu0 0.0
  %1529 = vmatpush1.msra.mxu0 0.0
  %1530 = vmatprep.subr.mxu0 0.0
  %1531 = vmatpush1.msra.mxu0 0.0
  %1532 = vmatprep.subr.mxu0 0.0
  %1533 = vmatpush1.msra.mxu0 0.0
  %1534 = vmatprep.subr.mxu0 0.0
  %1535 = vmatpush1.msra.mxu0 0.0
  %1536 = vmatprep.subr.mxu0 0.0
  %1537 = vmatpush1.msra.mxu0 0.0
  %1538 = vmatprep.subr.mxu0 0.0
  %1539 = vmatpush1.msra.mxu0 0.0
  %1540 = vmatprep.subr.mxu0 0.0
  %1541 = vmatpush1.msra.mxu0 0.0
  %1542 = vmatprep.subr.mxu0 0.0
  %1543 = vmatpush1.msra.mxu0 0.0
  %1544 = vmatprep.subr.mxu0 0.0
  %1545 = vmatpush1.msra.mxu0 0.0
  %1546 = vmatprep.subr.mxu0 0.0
  %1547 = vmatpush1.msra.mxu0 0.0
  %1548 = vmatprep.subr.mxu0 0.0
  %1549 = vmatpush1.msra.mxu0 0.0
  %1550 = vmatprep.subr.mxu0 0.0
  %1551 = vmatpush1.msra.mxu0 0.0
  %1552 = vmatprep.subr.mxu0 %v697
  %1553 = vmatpush1.msra.mxu0 %v696
  %1554 = vmatprep.subr.mxu0 %v690
  %1555 = vmatpush1.msra.mxu0 %v689
  %1556 = vmatprep.subr.mxu0 0.0
  %1557 = vmatpush2.msra.mxu0 0.0
  %1558 = vmatprep.subr.mxu0 0.0
  %1559 = vmatpush2.msra.mxu0 0.0
  %1560 = vmatprep.subr.mxu0 0.0
  %1561 = vmatpush2.msra.mxu0 0.0
  %1562 = vmatprep.subr.mxu0 0.0
  %1563 = vmatpush2.msra.mxu0 0.0
  %1564 = vmatprep.subr.mxu0 0.0
  %1565 = vmatpush2.msra.mxu0 0.0
  %1566 = vmatprep.subr.mxu0 0.0
  %1567 = vmatpush2.msra.mxu0 0.0
  %1568 = vmatprep.subr.mxu0 0.0
  %1569 = vmatpush2.msra.mxu0 0.0
  %1570 = vmatprep.subr.mxu0 0.0
  %1571 = vmatpush2.msra.mxu0 0.0
  %1572 = vmatprep.subr.mxu0 0.0
  %1573 = vmatpush2.msra.mxu0 0.0
  %1574 = vmatprep.subr.mxu0 0.0
  %1575 = vmatpush2.msra.mxu0 0.0
  %1576 = vmatprep.subr.mxu0 0.0
  %1577 = vmatpush2.msra.mxu0 0.0
  %1578 = vmatprep.subr.mxu0 0.0
  %1579 = vmatpush2.msra.mxu0 0.0
  %1580 = vmatprep.subr.mxu0 0.0
  %1581 = vmatpush2.msra.mxu0 0.0
  %1582 = vmatprep.subr.mxu0 0.0
  %1583 = vmatpush2.msra.mxu0 0.0
  %1584 = vmatprep.subr.mxu0 0.0
  %1585 = vmatpush2.msra.mxu0 0.0
  %1586 = vmatprep.subr.mxu0 0.0
  %1587 = vmatpush2.msra.mxu0 0.0
  %1588 = vmatprep.mubr.f32.mxu0 0.0
  %1589 = vmatmul.mubr.f32.gmra.mxu0 %v741
  %v1590 = vpop.f32.mrf.mxu0
  %v1591 = vadd.f32 %v1520, %v1590
  %v1592 = vpop.f32.mrf.mxu0
  %v1593 = vadd.f32 %v1522, %v1592
  %1594 = vdwg.mxu0
  %1595 = vmatprep.subr.mxu0 0.0
  %1596 = vmatpush1.msra.mxu0 %v124
  %1597 = vmatprep.subr.mxu0 0.0
  %1598 = vmatpush1.msra.mxu0 %v117
  %1599 = vmatprep.subr.mxu0 0.0
  %1600 = vmatpush1.msra.mxu0 %v110
  %1601 = vmatprep.subr.mxu0 0.0
  %1602 = vmatpush1.msra.mxu0 %v103
  %1603 = vmatprep.subr.mxu0 0.0
  %1604 = vmatpush1.msra.mxu0 %v96
  %1605 = vmatprep.subr.mxu0 0.0
  %1606 = vmatpush1.msra.mxu0 %v89
  %1607 = vmatprep.subr.mxu0 0.0
  %1608 = vmatpush1.msra.mxu0 %v82
  %1609 = vmatprep.subr.mxu0 0.0
  %1610 = vmatpush1.msra.mxu0 %v75
  %1611 = vmatprep.subr.mxu0 0.0
  %1612 = vmatpush1.msra.mxu0 %v68
  %1613 = vmatprep.subr.mxu0 0.0
  %1614 = vmatpush1.msra.mxu0 %v61
  %1615 = vmatprep.subr.mxu0 0.0
  %1616 = vmatpush1.msra.mxu0 %v54
  %1617 = vmatprep.subr.mxu0 0.0
  %1618 = vmatpush1.msra.mxu0 %v47
  %1619 = vmatprep.subr.mxu0 0.0
  %1620 = vmatpush1.msra.mxu0 %v40
  %1621 = vmatprep.subr.mxu0 0.0
  %1622 = vmatpush1.msra.mxu0 %v33
  %1623 = vmatprep.subr.mxu0 0.0
  %1624 = vmatpush1.msra.mxu0 %v26
  %1625 = vmatprep.subr.mxu0 0.0
  %1626 = vmatpush1.msra.mxu0 %v19
  %1627 = vmatprep.subr.mxu0 0.0
  %1628 = vmatpush2.msra.mxu0 %v236
  %1629 = vmatprep.subr.mxu0 0.0
  %1630 = vmatpush2.msra.mxu0 %v229
  %1631 = vmatprep.subr.mxu0 0.0
  %1632 = vmatpush2.msra.mxu0 %v222
  %1633 = vmatprep.subr.mxu0 0.0
  %1634 = vmatpush2.msra.mxu0 %v215
  %1635 = vmatprep.subr.mxu0 0.0
  %1636 = vmatpush2.msra.mxu0 %v208
  %1637 = vmatprep.subr.mxu0 0.0
  %1638 = vmatpush2.msra.mxu0 %v201
  %1639 = vmatprep.subr.mxu0 0.0
  %1640 = vmatpush2.msra.mxu0 %v194
  %1641 = vmatprep.subr.mxu0 0.0
  %1642 = vmatpush2.msra.mxu0 %v187
  %1643 = vmatprep.subr.mxu0 0.0
  %1644 = vmatpush2.msra.mxu0 %v180
  %1645 = vmatprep.subr.mxu0 0.0
  %1646 = vmatpush2.msra.mxu0 %v173
  %1647 = vmatprep.subr.mxu0 0.0
  %1648 = vmatpush2.msra.mxu0 %v166
  %1649 = vmatprep.subr.mxu0 0.0
  %1650 = vmatpush2.msra.mxu0 %v159
  %1651 = vmatprep.subr.mxu0 0.0
  %1652 = vmatpush2.msra.mxu0 %v152
  %1653 = vmatprep.subr.mxu0 0.0
  %1654 = vmatpush2.msra.mxu0 %v145
  %1655 = vmatprep.subr.mxu0 0.0
  %1656 = vmatpush2.msra.mxu0 %v138
  %1657 = vmatprep.subr.mxu0 0.0
  %1658 = vmatpush2.msra.mxu0 %v131
  %1659 = vmatprep.mubr.f32.mxu0 %v716
  %1660 = vmatmul.mubr.f32.gmra.mxu0 %v708
  %v1661 = vpop.f32.mrf.mxu0
  %v1662 = vadd.f32 0.0, %v1661
  %v1663 = vpop.f32.mrf.mxu0
  %1664 = vdwg.mxu0
  %1665 = vmatprep.subr.mxu0 0.0
  %1666 = vmatpush1.msra.mxu0 %v348
  %1667 = vmatprep.subr.mxu0 0.0
  %1668 = vmatpush1.msra.mxu0 %v341
  %1669 = vmatprep.subr.mxu0 0.0
  %1670 = vmatpush1.msra.mxu0 %v334
  %1671 = vmatprep.subr.mxu0 0.0
  %1672 = vmatpush1.msra.mxu0 %v327
  %1673 = vmatprep.subr.mxu0 0.0
  %1674 = vmatpush1.msra.mxu0 %v320
  %1675 = vmatprep.subr.mxu0 0.0
  %1676 = vmatpush1.msra.mxu0 %v313
  %1677 = vmatprep.subr.mxu0 0.0
  %1678 = vmatpush1.msra.mxu0 %v306
  %1679 = vmatprep.subr.mxu0 0.0
  %1680 = vmatpush1.msra.mxu0 %v299
  %1681 = vmatprep.subr.mxu0 0.0
  %1682 = vmatpush1.msra.mxu0 %v292
  %1683 = vmatprep.subr.mxu0 0.0
  %1684 = vmatpush1.msra.mxu0 %v285
  %1685 = vmatprep.subr.mxu0 0.0
  %1686 = vmatpush1.msra.mxu0 %v278
  %1687 = vmatprep.subr.mxu0 0.0
  %1688 = vmatpush1.msra.mxu0 %v271
  %1689 = vmatprep.subr.mxu0 0.0
  %1690 = vmatpush1.msra.mxu0 %v264
  %1691 = vmatprep.subr.mxu0 0.0
  %1692 = vmatpush1.msra.mxu0 %v257
  %1693 = vmatprep.subr.mxu0 0.0
  %1694 = vmatpush1.msra.mxu0 %v250
  %1695 = vmatprep.subr.mxu0 0.0
  %1696 = vmatpush1.msra.mxu0 %v243
  %1697 = vmatprep.subr.mxu0 0.0
  %1698 = vmatpush2.msra.mxu0 %v460
  %1699 = vmatprep.subr.mxu0 0.0
  %1700 = vmatpush2.msra.mxu0 %v453
  %1701 = vmatprep.subr.mxu0 0.0
  %1702 = vmatpush2.msra.mxu0 %v446
  %1703 = vmatprep.subr.mxu0 0.0
  %1704 = vmatpush2.msra.mxu0 %v439
  %1705 = vmatprep.subr.mxu0 0.0
  %1706 = vmatpush2.msra.mxu0 %v432
  %1707 = vmatprep.subr.mxu0 0.0
  %1708 = vmatpush2.msra.mxu0 %v425
  %1709 = vmatprep.subr.mxu0 0.0
  %1710 = vmatpush2.msra.mxu0 %v418
  %1711 = vmatprep.subr.mxu0 0.0
  %1712 = vmatpush2.msra.mxu0 %v411
  %1713 = vmatprep.subr.mxu0 0.0
  %1714 = vmatpush2.msra.mxu0 %v404
  %1715 = vmatprep.subr.mxu0 0.0
  %1716 = vmatpush2.msra.mxu0 %v397
  %1717 = vmatprep.subr.mxu0 0.0
  %1718 = vmatpush2.msra.mxu0 %v390
  %1719 = vmatprep.subr.mxu0 0.0
  %1720 = vmatpush2.msra.mxu0 %v383
  %1721 = vmatprep.subr.mxu0 0.0
  %1722 = vmatpush2.msra.mxu0 %v376
  %1723 = vmatprep.subr.mxu0 0.0
  %1724 = vmatpush2.msra.mxu0 %v369
  %1725 = vmatprep.subr.mxu0 0.0
  %1726 = vmatpush2.msra.mxu0 %v362
  %1727 = vmatprep.subr.mxu0 0.0
  %1728 = vmatpush2.msra.mxu0 %v355
  %1729 = vmatprep.mubr.f32.mxu0 %v717
  %1730 = vmatmul.mubr.f32.gmra.mxu0 %v715
  %v1731 = vpop.f32.mrf.mxu0
  %v1732 = vadd.f32 %v1662, %v1731
  %v1733 = vpop.f32.mrf.mxu0
  %1734 = vdwg.mxu0
  %1735 = vmatprep.subr.mxu0 0.0
  %1736 = vmatpush1.msra.mxu0 %v572
  %1737 = vmatprep.subr.mxu0 0.0
  %1738 = vmatpush1.msra.mxu0 %v565
  %1739 = vmatprep.subr.mxu0 0.0
  %1740 = vmatpush1.msra.mxu0 %v558
  %1741 = vmatprep.subr.mxu0 0.0
  %1742 = vmatpush1.msra.mxu0 %v551
  %1743 = vmatprep.subr.mxu0 0.0
  %1744 = vmatpush1.msra.mxu0 %v544
  %1745 = vmatprep.subr.mxu0 0.0
  %1746 = vmatpush1.msra.mxu0 %v537
  %1747 = vmatprep.subr.mxu0 0.0
  %1748 = vmatpush1.msra.mxu0 %v530
  %1749 = vmatprep.subr.mxu0 0.0
  %1750 = vmatpush1.msra.mxu0 %v523
  %1751 = vmatprep.subr.mxu0 0.0
  %1752 = vmatpush1.msra.mxu0 %v516
  %1753 = vmatprep.subr.mxu0 0.0
  %1754 = vmatpush1.msra.mxu0 %v509
  %1755 = vmatprep.subr.mxu0 0.0
  %1756 = vmatpush1.msra.mxu0 %v502
  %1757 = vmatprep.subr.mxu0 0.0
  %1758 = vmatpush1.msra.mxu0 %v495
  %1759 = vmatprep.subr.mxu0 0.0
  %1760 = vmatpush1.msra.mxu0 %v488
  %1761 = vmatprep.subr.mxu0 0.0
  %1762 = vmatpush1.msra.mxu0 %v481
  %1763 = vmatprep.subr.mxu0 0.0
  %1764 = vmatpush1.msra.mxu0 %v474
  %1765 = vmatprep.subr.mxu0 0.0
  %1766 = vmatpush1.msra.mxu0 %v467
  %1767 = vmatprep.subr.mxu0 0.0
  %1768 = vmatpush2.msra.mxu0 %v684
  %1769 = vmatprep.subr.mxu0 0.0
  %1770 = vmatpush2.msra.mxu0 %v677
  %1771 = vmatprep.subr.mxu0 0.0
  %1772 = vmatpush2.msra.mxu0 %v670
  %1773 = vmatprep.subr.mxu0 0.0
  %1774 = vmatpush2.msra.mxu0 %v663
  %1775 = vmatprep.subr.mxu0 0.0
  %1776 = vmatpush2.msra.mxu0 %v656
  %1777 = vmatprep.subr.mxu0 0.0
  %1778 = vmatpush2.msra.mxu0 %v649
  %1779 = vmatprep.subr.mxu0 0.0
  %1780 = vmatpush2.msra.mxu0 %v642
  %1781 = vmatprep.subr.mxu0 0.0
  %1782 = vmatpush2.msra.mxu0 %v635
  %1783 = vmatprep.subr.mxu0 0.0
  %1784 = vmatpush2.msra.mxu0 %v628
  %1785 = vmatprep.subr.mxu0 0.0
  %1786 = vmatpush2.msra.mxu0 %v621
  %1787 = vmatprep.subr.mxu0 0.0
  %1788 = vmatpush2.msra.mxu0 %v614
  %1789 = vmatprep.subr.mxu0 0.0
  %1790 = vmatpush2.msra.mxu0 %v607
  %1791 = vmatprep.subr.mxu0 0.0
  %1792 = vmatpush2.msra.mxu0 %v600
  %1793 = vmatprep.subr.mxu0 0.0
  %1794 = vmatpush2.msra.mxu0 %v593
  %1795 = vmatprep.subr.mxu0 0.0
  %1796 = vmatpush2.msra.mxu0 %v586
  %1797 = vmatprep.subr.mxu0 0.0
  %1798 = vmatpush2.msra.mxu0 %v579
  %1799 = vmatprep.mubr.f32.mxu0 %v733
  %1800 = vmatmul.mubr.f32.gmra.mxu0 %v725
  %v1801 = vpop.f32.mrf.mxu0
  %v1802 = vadd.f32 %v1732, %v1801
  %v1803 = vpop.f32.mrf.mxu0
  %1804 = vdwg.mxu0
  %1805 = vmatprep.subr.mxu0 0.0
  %1806 = vmatpush1.msra.mxu0 0.0
  %1807 = vmatprep.subr.mxu0 0.0
  %1808 = vmatpush1.msra.mxu0 0.0
  %1809 = vmatprep.subr.mxu0 0.0
  %1810 = vmatpush1.msra.mxu0 0.0
  %1811 = vmatprep.subr.mxu0 0.0
  %1812 = vmatpush1.msra.mxu0 0.0
  %1813 = vmatprep.subr.mxu0 0.0
  %1814 = vmatpush1.msra.mxu0 0.0
  %1815 = vmatprep.subr.mxu0 0.0
  %1816 = vmatpush1.msra.mxu0 0.0
  %1817 = vmatprep.subr.mxu0 0.0
  %1818 = vmatpush1.msra.mxu0 0.0
  %1819 = vmatprep.subr.mxu0 0.0
  %1820 = vmatpush1.msra.mxu0 0.0
  %1821 = vmatprep.subr.mxu0 0.0
  %1822 = vmatpush1.msra.mxu0 0.0
  %1823 = vmatprep.subr.mxu0 0.0
  %1824 = vmatpush1.msra.mxu0 0.0
  %1825 = vmatprep.subr.mxu0 0.0
  %1826 = vmatpush1.msra.mxu0 0.0
  %1827 = vmatprep.subr.mxu0 0.0
  %1828 = vmatpush1.msra.mxu0 0.0
  %1829 = vmatprep.subr.mxu0 0.0
  %1830 = vmatpush1.msra.mxu0 0.0
  %1831 = vmatprep.subr.mxu0 0.0
  %1832 = vmatpush1.msra.mxu0 0.0
  %1833 = vmatprep.subr.mxu0 0.0
  %1834 = vmatpush1.msra.mxu0 %v698
  %1835 = vmatprep.subr.mxu0 0.0
  %1836 = vmatpush1.msra.mxu0 %v691
  %1837 = vmatprep.subr.mxu0 0.0
  %1838 = vmatpush2.msra.mxu0 0.0
  %1839 = vmatprep.subr.mxu0 0.0
  %1840 = vmatpush2.msra.mxu0 0.0
  %1841 = vmatprep.subr.mxu0 0.0
  %1842 = vmatpush2.msra.mxu0 0.0
  %1843 = vmatprep.subr.mxu0 0.0
  %1844 = vmatpush2.msra.mxu0 0.0
  %1845 = vmatprep.subr.mxu0 0.0
  %1846 = vmatpush2.msra.mxu0 0.0
  %1847 = vmatprep.subr.mxu0 0.0
  %1848 = vmatpush2.msra.mxu0 0.0
  %1849 = vmatprep.subr.mxu0 0.0
  %1850 = vmatpush2.msra.mxu0 0.0
  %1851 = vmatprep.subr.mxu0 0.0
  %1852 = vmatpush2.msra.mxu0 0.0
  %1853 = vmatprep.subr.mxu0 0.0
  %1854 = vmatpush2.msra.mxu0 0.0
  %1855 = vmatprep.subr.mxu0 0.0
  %1856 = vmatpush2.msra.mxu0 0.0
  %1857 = vmatprep.subr.mxu0 0.0
  %1858 = vmatpush2.msra.mxu0 0.0
  %1859 = vmatprep.subr.mxu0 0.0
  %1860 = vmatpush2.msra.mxu0 0.0
  %1861 = vmatprep.subr.mxu0 0.0
  %1862 = vmatpush2.msra.mxu0 0.0
  %1863 = vmatprep.subr.mxu0 0.0
  %1864 = vmatpush2.msra.mxu0 0.0
  %1865 = vmatprep.subr.mxu0 0.0
  %1866 = vmatpush2.msra.mxu0 0.0
  %1867 = vmatprep.subr.mxu0 0.0
  %1868 = vmatpush2.msra.mxu0 0.0
  %1869 = vmatprep.mubr.f32.mxu0 0.0
  %1870 = vmatmul.mubr.f32.gmra.mxu0 %v741
  %v1871 = vpop.f32.mrf.mxu0
  %v1872 = vadd.f32 %v1802, %v1871
  %v1873 = vpop.f32.mrf.mxu0
  %1874 = vdwg.mxu0
  %v1882 = vcombine.low %v1023, %v1025
  %v1883 = vcombine.low %v1307, %v1309
  %v1885 = vunpack.c.l.s4 1983009808
  %v1886 = vunpack.c.0.s8 %v1885
  %v1887 = vlaneseq
  %v1888 = vshrl.u32 %v1887, 7
  %v1889 = vsub.s32 %v1886, %v1888
  %v1890 = vrot.slane %v1882, %v1889
  %v1892 = vunpack.c.l.s4 1983009808
  %v1893 = vunpack.c.0.s8 %v1892
  %v1894 = vlaneseq
  %v1895 = vshrl.u32 %v1894, 7
  %v1896 = vsub.s32 %v1893, %v1895
  %v1897 = vrot.slane %v1883, %v1896
  %v1898 = vcombine.low %v1890, %v1897
  %v1899 = vcombine.low %v1591, %v1593
  %v1901 = vunpack.c.l.s4 1983009808
  %v1902 = vunpack.c.0.s8 %v1901
  %v1903 = vlaneseq
  %v1904 = vshrl.u32 %v1903, 7
  %v1905 = vsub.s32 %v1902, %v1904
  %v1906 = vrot.slane %v1899, %v1905
  %v1908 = vunpack.c.l.s4 1983009808
  %v1909 = vunpack.c.0.s8 %v1908
  %v1910 = vlaneseq
  %v1911 = vshrl.u32 %v1910, 7
  %v1912 = vsub.s32 %v1909, %v1911
  %v1913 = vrot.slane %v1872, %v1912
  %v1914 = vcombine.low %v1906, %v1913
  %1917 = vst [vmem:[%s2] sm:$0xff] %v1898
  %vm1918 = vcmask 1041408
  %vm1919 = vcmask 1043458
  %vm1920 = vmor %vm1919, %vm1918
  %vm1921 = vcmask 128004
  %vm1922 = vmor %vm1921, %vm1920
  %1923 = vst.msk [vmem:[%s2 + $0x8] sm:$0x3f] %vm1922, %v1914
  // Predicated region
  $region10: #{rbs_dense_density.1} parent=0 // pred_check
    _
  $region11: #{rbs_dense_density.1} parent=0 // pred_check_branch
    %1925 = sbr.rel (0) target = $region13
  $region12: #{rbs_dense_density.1} parent=0 // pred_region
    _
  $region13: #{rbs_dense_density.1} parent=0 // pred_fallthru
    _
  // Predicated region
  $region14: #{rbs_dense_density.1} parent=0 // pred_check
    _
  $region15: #{rbs_dense_density.1} parent=0 // pred_check_branch
    %1927 = sbr.rel (0) target = $region17
  $region16: #{rbs_dense_density.1} parent=0 // pred_region
    _
  $region17: #{rbs_dense_density.1} parent=0 // pred_fallthru
    _

</llo_original>
